<compile_context>
chip_gen: v7x
topology: tpu7x:2x2x1
jax: 0.10.0
libtpu: 0.0.40
codegen_flags: <defaults>
</compile_context>

<pallas_src>
import functools
import math

import jax
import jax.numpy as jnp
from jax.experimental import pallas as pl
from jax.experimental.pallas import tpu as pltpu


def _layernorm(v, w, b, eps=1e-5):
    mu = jnp.mean(v, axis=-1, keepdims=True)
    var = jnp.mean((v - mu) ** 2, axis=-1, keepdims=True)
    return (v - mu) * jax.lax.rsqrt(var + eps) * w + b


def block_kernel(x_ref,
                 ln1w_ref, ln1b_ref,
                 wqkv_ref, bqkv_ref,
                 wo_ref, bo_ref,
                 ln2w_ref, ln2b_ref,
                 wfc_ref, bfc_ref,
                 wpr_ref, bpr_ref,
                 o_ref,
                 k_cache, v_cache, q_scr, m_sc, l_sc, acc_sc, y_slab,
                 *, n_head):
    qi = pl.program_id(1)
    tq = x_ref.shape[1]
    C = x_ref.shape[2]
    hd = C // n_head
    q_start = pl.multiple_of(qi * tq, tq)

    x = x_ref[0].astype(jnp.float32)                         # (tq, C) query tile

    # ---- ln_1 (f32) + fused qkv projection (bf16 MXU, f32 accumulation) ----
    h = _layernorm(x, ln1w_ref[...], ln1b_ref[...])
    qkv = jnp.dot(h.astype(jnp.bfloat16), wqkv_ref[...],
                  preferred_element_type=jnp.float32) + bqkv_ref[...]    # (tq, 3C)
    # (q columns of wqkv/bqkv were pre-scaled by 1/sqrt(hd) in prepare_params.)

    # Stage q/k/v in head-major layout once per tile (small per-head column copies);
    # the hot per-KV-block loop below then runs fully batched with no slicing/relayout.
    for hh in range(n_head):
        c0 = hh * hd
        q_scr[hh] = qkv[:, c0:c0 + hd].astype(jnp.bfloat16)
        k_cache[hh, pl.ds(q_start, tq), :] = \
            qkv[:, C + c0:C + c0 + hd].astype(jnp.bfloat16)
        v_cache[hh, pl.ds(q_start, tq), :] = \
            qkv[:, 2 * C + c0:2 * C + c0 + hd].astype(jnp.bfloat16)

    q_h = q_scr[...]                                         # (H, tq, hd) bf16

    # ---- diagonal KV block: the only one needing a causal mask.  It fully overwrites
    #      the online-softmax scratch state, so no cross-grid-step zeroing is needed.
    k_diag = k_cache[:, pl.ds(q_start, tq), :]               # (H, tq, hd) bf16
    v_diag = v_cache[:, pl.ds(q_start, tq), :]
    row = jax.lax.broadcasted_iota(jnp.int32, (1, tq, tq), 1)
    col = jax.lax.broadcasted_iota(jnp.int32, (1, tq, tq), 2)
    causal = row >= col
    s = jnp.einsum('hqd,hkd->hqk', q_h, k_diag,
                   preferred_element_type=jnp.float32)       # (H, tq, tq)
    s = jnp.where(causal, s, -jnp.inf)
    m0 = jnp.max(s, axis=-1, keepdims=True)                  # (H, tq, 1)
    p = jnp.exp(s - m0)
    m_sc[...] = m0
    l_sc[...] = jnp.sum(p, axis=-1, keepdims=True)
    acc_sc[...] = jnp.einsum('hqk,hkd->hqd', p.astype(jnp.bfloat16), v_diag,
                             preferred_element_type=jnp.float32)         # (H, tq, hd)

    # ---- strictly-past KV blocks: unmasked, flash-style online-softmax updates.
    @pl.loop(0, qi)
    def _(j):
        kv0 = pl.multiple_of(j * tq, tq)
        k_blk = k_cache[:, pl.ds(kv0, tq), :]
        v_blk = v_cache[:, pl.ds(kv0, tq), :]
        s = jnp.einsum('hqd,hkd->hqk', q_scr[...], k_blk,
                       preferred_element_type=jnp.float32)
        m_prev = m_sc[...]
        m_new = jnp.maximum(m_prev, jnp.max(s, axis=-1, keepdims=True))
        alpha = jnp.exp(m_prev - m_new)
        p = jnp.exp(s - m_new)
        l_sc[...] = alpha * l_sc[...] + jnp.sum(p, axis=-1, keepdims=True)
        acc_sc[...] = alpha * acc_sc[...] + jnp.einsum(
            'hqk,hkd->hqd', p.astype(jnp.bfloat16), v_blk,
            preferred_element_type=jnp.float32)
        m_sc[...] = m_new

    # ---- normalize, merge heads into a lane-dense slab, single output projection ----
    out_h = acc_sc[...] * pl.reciprocal(l_sc[...], approx=True)          # (H, tq, hd)
    for hh in range(n_head):
        y_slab[:, hh * hd:(hh + 1) * hd] = out_h[hh].astype(jnp.bfloat16)
    y = jnp.dot(y_slab[...], wo_ref[...],
                preferred_element_type=jnp.float32) + bo_ref[...]        # (tq, C)

    x1 = x + y                                               # first residual (f32)

    # ---- ln_2 + MLP with tanh-GELU (bf16 MXU matmuls, f32 accumulation) ----
    # GELU math kept in f32 (correct on v5e; bf16 elementwise is an optional v6e/v7x tweak).
    h2 = _layernorm(x1, ln2w_ref[...], ln2b_ref[...])
    f = jnp.dot(h2.astype(jnp.bfloat16), wfc_ref[...],
                preferred_element_type=jnp.float32) + bfc_ref[...]       # (tq, 4C)
    cg = math.sqrt(2.0 / math.pi)
    g = 0.5 * f * (1.0 + jnp.tanh(cg * (f + 0.044715 * f * f * f)))
    mlp_out = jnp.dot(g.astype(jnp.bfloat16), wpr_ref[...],
                      preferred_element_type=jnp.float32) + bpr_ref[...]  # (tq, C)

    o_ref[0] = (x1 + mlp_out).astype(o_ref.dtype)            # second residual


def prepare_params(params, n_head):
    """One-time parameter prep: fold 1/sqrt(hd) into the q projection, cast to bf16."""
    (ln1w, ln1b, wqkv, bqkv, wo, bo, ln2w, ln2b, wfc, bfc, wpr, bpr) = params
    C = wqkv.shape[0]
    scale = 1.0 / math.sqrt(C // n_head)
    wqkv = wqkv.at[:, :C].multiply(scale)
    bqkv = bqkv.at[:, :C].multiply(scale)
    return (ln1w, ln1b,
            wqkv.astype(jnp.bfloat16), bqkv,
            wo.astype(jnp.bfloat16), bo,
            ln2w, ln2b,
            wfc.astype(jnp.bfloat16), bfc,
            wpr.astype(jnp.bfloat16), bpr)


def gpt2_block(x, kparams, n_head, *, q_tile=256, vmem_limit_bytes=48 * 1024 * 1024):
    B, T, C = x.shape
    assert C % n_head == 0
    hd = C // n_head

    tq = min(T, q_tile)
    # tq must divide T; multiples of 16 keep bf16 cache stores sublane-aligned.
    assert T % tq == 0 and (tq == T or tq % 16 == 0), "bad sequence tile"
    nq = T // tq

    # Whole-array VMEM residency for weights/biases/LN params: fetched once,
    # single-buffered (no per-step DMA, no double-buffer VMEM cost).
    weight_spec = pl.BlockSpec(memory_space=pltpu.MemorySpace.VMEM)
    in_specs = ([pl.BlockSpec((1, tq, C), lambda b, qi: (b, qi, 0))]
                + [weight_spec] * len(kparams))

    flops = int(24 * B * T * C * C + 2 * B * T * T * C)          # projections + attention
    transcendentals = int(B * n_head * T * T // 2 + 4 * B * T * C)
    bytes_accessed = int(2 * 4 * B * T * C + 2 * 12 * C * C)

    return pl.pallas_call(
        functools.partial(block_kernel, n_head=n_head),
        out_shape=jax.ShapeDtypeStruct((B, T, C), x.dtype),
        grid_spec=pltpu.PrefetchScalarGridSpec(
            num_scalar_prefetch=0,
            grid=(B, nq),                    # b parallel; qi sequential (cache fill order)
            in_specs=in_specs,
            out_specs=pl.BlockSpec((1, tq, C), lambda b, qi: (b, qi, 0)),
            scratch_shapes=[
                pltpu.VMEM((n_head, T, hd), jnp.bfloat16),   # K cache (persists across steps)
                pltpu.VMEM((n_head, T, hd), jnp.bfloat16),   # V cache
                pltpu.VMEM((n_head, tq, hd), jnp.bfloat16),  # head-major q staging
                pltpu.VMEM((n_head, tq, 1), jnp.float32),    # online-softmax max
                pltpu.VMEM((n_head, tq, 1), jnp.float32),    # online-softmax sum
                pltpu.VMEM((n_head, tq, hd), jnp.float32),   # attention accumulator
                pltpu.VMEM((tq, C), jnp.bfloat16),           # head-merge slab (lane-dense)
            ],
        ),
        compiler_params=pltpu.CompilerParams(
            dimension_semantics=("parallel", "arbitrary"),
            vmem_limit_bytes=vmem_limit_bytes,   # v7x-safe; can raise on v5e/v6e
        ),
        cost_estimate=pl.CostEstimate(flops=flops, transcendentals=transcendentals,
                                      bytes_accessed=bytes_accessed),
        input_output_aliases={0: 0},             # x fully consumed -> reuse its HBM buffer
    )(x, *kparams)


def init_params(key, C):
    ks = jax.random.split(key, 4)
    std = 0.02
    # weights stored as (in, out) = PyTorch W.T
    wqkv = jax.random.normal(ks[0], (C, 3 * C), jnp.float32) * std
    wo   = jax.random.normal(ks[1], (C, C), jnp.float32) * std
    wfc  = jax.random.normal(ks[2], (C, 4 * C), jnp.float32) * std
    wpr  = jax.random.normal(ks[3], (4 * C, C), jnp.float32) * std
    # biases / LN params as (1, dim) for TPU-friendly 2D layout
    ln1w = jnp.ones((1, C), jnp.float32)
    ln1b = jnp.zeros((1, C), jnp.float32)
    ln2w = jnp.ones((1, C), jnp.float32)
    ln2b = jnp.zeros((1, C), jnp.float32)
    bqkv = jnp.zeros((1, 3 * C), jnp.float32)
    bo   = jnp.zeros((1, C), jnp.float32)
    bfc  = jnp.zeros((1, 4 * C), jnp.float32)
    bpr  = jnp.zeros((1, C), jnp.float32)
    return (ln1w, ln1b, wqkv, bqkv, wo, bo, ln2w, ln2b, wfc, bfc, wpr, bpr)


def reference_block(x, params, n_head):
    (ln1w, ln1b, wqkv, bqkv, wo, bo, ln2w, ln2b, wfc, bfc, wpr, bpr) = params
    B, T, C = x.shape
    hd = C // n_head

    def ln(v, w, b):
        mu = jnp.mean(v, -1, keepdims=True)
        var = jnp.mean((v - mu) ** 2, -1, keepdims=True)
        return (v - mu) * jax.lax.rsqrt(var + 1e-5) * w + b

    h = ln(x, ln1w[0], ln1b[0])
    qkv = h @ wqkv + bqkv[0]
    q, k, v = jnp.split(qkv, 3, axis=-1)
    q = q.reshape(B, T, n_head, hd).transpose(0, 2, 1, 3)
    k = k.reshape(B, T, n_head, hd).transpose(0, 2, 1, 3)
    v = v.reshape(B, T, n_head, hd).transpose(0, 2, 1, 3)
    att = (q @ k.transpose(0, 1, 3, 2)) / math.sqrt(hd)
    mask = jnp.tril(jnp.ones((T, T), bool))
    att = jnp.where(mask, att, -jnp.inf)
    att = jax.nn.softmax(att, axis=-1)
    y = (att @ v).transpose(0, 2, 1, 3).reshape(B, T, C)
    y = y @ wo + bo[0]
    x1 = x + y
    h2 = ln(x1, ln2w[0], ln2b[0])
    f = h2 @ wfc + bfc[0]
    c = math.sqrt(2.0 / math.pi)
    g = 0.5 * f * (1.0 + jnp.tanh(c * (f + 0.044715 * f ** 3)))
    return x1 + (g @ wpr + bpr[0])


if __name__ == "__main__":
    B, T, C, n_head = 2, 32, 32, 4
    key = jax.random.PRNGKey(0)
    kx, kp = jax.random.split(key)
    x = jax.random.normal(kx, (B, T, C), jnp.float32)
    params = init_params(kp, C)

    # Reference first: the kernel aliases x's buffer.
    ref = jax.block_until_ready(reference_block(x, params, n_head))

    kparams = prepare_params(params, n_head)

    # Multi-tile config (T >> tq): exercises the K/V cache reuse, the off-diagonal
    # unmasked block loop, the diagonal masking, and B > 1 cache overwrite.
    out = jax.block_until_ready(gpt2_block(x, kparams, n_head, q_tile=16))
    assert out.shape == (B, T, C)
    err = float(jnp.max(jnp.abs(out - ref)))
    assert jnp.allclose(out, ref, atol=2e-2, rtol=2e-2), err

    # Single-tile config (tq == T): diagonal-only path.
    out1 = jax.block_until_ready(gpt2_block(x, kparams, n_head, q_tile=T))
    err1 = float(jnp.max(jnp.abs(out1 - ref)))
    assert jnp.allclose(out1, ref, atol=2e-2, rtol=2e-2), err1

    print("KERNEL_OK")
</pallas_src>

<mosaic_0001>
module attributes {stable_mosaic.version = 11 : i64} {
  func.func @block_kernel(%arg0: i32, %arg1: i32, %arg2: memref<1x16x32xf32, #tpu.memory_space<vmem>>, %arg3: memref<1x32xf32, #tpu.memory_space<vmem>>, %arg4: memref<1x32xf32, #tpu.memory_space<vmem>>, %arg5: memref<32x96xbf16, #tpu.memory_space<vmem>>, %arg6: memref<1x96xf32, #tpu.memory_space<vmem>>, %arg7: memref<32x32xbf16, #tpu.memory_space<vmem>>, %arg8: memref<1x32xf32, #tpu.memory_space<vmem>>, %arg9: memref<1x32xf32, #tpu.memory_space<vmem>>, %arg10: memref<1x32xf32, #tpu.memory_space<vmem>>, %arg11: memref<32x128xbf16, #tpu.memory_space<vmem>>, %arg12: memref<1x128xf32, #tpu.memory_space<vmem>>, %arg13: memref<128x32xbf16, #tpu.memory_space<vmem>>, %arg14: memref<1x32xf32, #tpu.memory_space<vmem>>, %arg15: memref<1x16x32xf32, #tpu.memory_space<vmem>>, %arg16: memref<4x32x8xbf16, #tpu.memory_space<vmem>>, %arg17: memref<4x32x8xbf16, #tpu.memory_space<vmem>>, %arg18: memref<4x16x8xbf16, #tpu.memory_space<vmem>>, %arg19: memref<4x16x1xf32, #tpu.memory_space<vmem>>, %arg20: memref<4x16x1xf32, #tpu.memory_space<vmem>>, %arg21: memref<4x16x8xf32, #tpu.memory_space<vmem>>, %arg22: memref<16x32xbf16, #tpu.memory_space<vmem>>) attributes {dimension_semantics = [#tpu.dimension_semantics<parallel>, #tpu.dimension_semantics<arbitrary>], iteration_bounds = array<i64: 2, 2>, scalar_prefetch = 0 : i64, scratch_operands = 7 : i64, tpu.core_type = #tpu.core_type<tc>, window_params = [{transform_indices = @transform_0, window_bounds = array<i64: 1, 16, 32>}, {pipeline_mode = #tpu.pipeline_mode<synchronous>, transform_indices = @transform_1, window_bounds = array<i64: 1, 32>}, {pipeline_mode = #tpu.pipeline_mode<synchronous>, transform_indices = @transform_2, window_bounds = array<i64: 1, 32>}, {pipeline_mode = #tpu.pipeline_mode<synchronous>, transform_indices = @transform_3, window_bounds = array<i64: 32, 96>}, {pipeline_mode = #tpu.pipeline_mode<synchronous>, transform_indices = @transform_4, window_bounds = array<i64: 1, 96>}, {pipeline_mode = #tpu.pipeline_mode<synchronous>, transform_indices = @transform_5, window_bounds = array<i64: 32, 32>}, {pipeline_mode = #tpu.pipeline_mode<synchronous>, transform_indices = @transform_6, window_bounds = array<i64: 1, 32>}, {pipeline_mode = #tpu.pipeline_mode<synchronous>, transform_indices = @transform_7, window_bounds = array<i64: 1, 32>}, {pipeline_mode = #tpu.pipeline_mode<synchronous>, transform_indices = @transform_8, window_bounds = array<i64: 1, 32>}, {pipeline_mode = #tpu.pipeline_mode<synchronous>, transform_indices = @transform_9, window_bounds = array<i64: 32, 128>}, {pipeline_mode = #tpu.pipeline_mode<synchronous>, transform_indices = @transform_10, window_bounds = array<i64: 1, 128>}, {pipeline_mode = #tpu.pipeline_mode<synchronous>, transform_indices = @transform_11, window_bounds = array<i64: 128, 32>}, {pipeline_mode = #tpu.pipeline_mode<synchronous>, transform_indices = @transform_12, window_bounds = array<i64: 1, 32>}, {transform_indices = @transform_13, window_bounds = array<i64: 1, 16, 32>}]} {
    %c16_i32 = arith.constant 16 : i32
    %0 = arith.muli %arg1, %c16_i32 : i32
    %1 = tpu.assume_multiple %0, 16 : i32
    %c0 = arith.constant 0 : index
    %c0_0 = arith.constant 0 : index
    %c0_1 = arith.constant 0 : index
    %2 = vector.load %arg2[%c0, %c0_0, %c0_1] : memref<1x16x32xf32, #tpu.memory_space<vmem>>, vector<1x16x32xf32>
    %3 = vector.shape_cast %2 : vector<1x16x32xf32> to vector<16x32xf32>
    %c0_2 = arith.constant 0 : index
    %c0_3 = arith.constant 0 : index
    %4 = vector.load %arg3[%c0_2, %c0_3] : memref<1x32xf32, #tpu.memory_space<vmem>>, vector<1x32xf32>
    %c0_4 = arith.constant 0 : index
    %c0_5 = arith.constant 0 : index
    %5 = vector.load %arg4[%c0_4, %c0_5] : memref<1x32xf32, #tpu.memory_space<vmem>>, vector<1x32xf32>
    %cst = arith.constant dense<0.000000e+00> : vector<16xf32>
    %6 = vector.multi_reduction <add>, %3, %cst [1] : vector<16x32xf32> to vector<16xf32>
    %7 = vector.shape_cast %6 : vector<16xf32> to vector<16x1xf32>
    %cst_6 = arith.constant 3.200000e+01 : f32
    %8 = vector.broadcast %cst_6 : f32 to vector<16x1xf32>
    %9 = arith.divf %7, %8 : vector<16x1xf32>
    %10 = vector.broadcast %9 : vector<16x1xf32> to vector<16x32xf32>
    %11 = arith.subf %3, %10 : vector<16x32xf32>
    %12 = arith.mulf %11, %11 : vector<16x32xf32>
    %cst_7 = arith.constant dense<0.000000e+00> : vector<16xf32>
    %13 = vector.multi_reduction <add>, %12, %cst_7 [1] : vector<16x32xf32> to vector<16xf32>
    %14 = vector.shape_cast %13 : vector<16xf32> to vector<16x1xf32>
    %cst_8 = arith.constant 3.200000e+01 : f32
    %15 = vector.broadcast %cst_8 : f32 to vector<16x1xf32>
    %16 = arith.divf %14, %15 : vector<16x1xf32>
    %17 = vector.broadcast %9 : vector<16x1xf32> to vector<16x32xf32>
    %18 = arith.subf %3, %17 : vector<16x32xf32>
    %cst_9 = arith.constant 9.99999974E-6 : f32
    %19 = vector.broadcast %cst_9 : f32 to vector<16x1xf32>
    %20 = arith.addf %16, %19 : vector<16x1xf32>
    %21 = math.rsqrt %20 : vector<16x1xf32>
    %22 = vector.broadcast %21 : vector<16x1xf32> to vector<16x32xf32>
    %23 = arith.mulf %18, %22 : vector<16x32xf32>
    %24 = vector.broadcast %4 : vector<1x32xf32> to vector<16x32xf32>
    %25 = arith.mulf %23, %24 : vector<16x32xf32>
    %26 = vector.broadcast %5 : vector<1x32xf32> to vector<16x32xf32>
    %27 = arith.addf %25, %26 : vector<16x32xf32>
    %28 = arith.truncf %27 : vector<16x32xf32> to vector<16x32xbf16>
    %c0_10 = arith.constant 0 : index
    %c0_11 = arith.constant 0 : index
    %29 = vector.load %arg5[%c0_10, %c0_11] : memref<32x96xbf16, #tpu.memory_space<vmem>>, vector<32x96xbf16>
    %cst_12 = arith.constant dense<0.000000e+00> : vector<16x96xf32>
    %30 = tpu.matmul %28, %29, %cst_12 {dimension_numbers = #tpu.dot_dimension_numbers<[1], [0], [0], [1], [0, 0, 1, 1], [], []>} : vector<16x32xbf16>, vector<32x96xbf16>, vector<16x96xf32> -> vector<16x96xf32>
    %c0_13 = arith.constant 0 : index
    %c0_14 = arith.constant 0 : index
    %31 = vector.load %arg6[%c0_13, %c0_14] : memref<1x96xf32, #tpu.memory_space<vmem>>, vector<1x96xf32>
    %32 = vector.broadcast %31 : vector<1x96xf32> to vector<16x96xf32>
    %33 = arith.addf %30, %32 : vector<16x96xf32>
    %34 = vector.extract_strided_slice %33 {offsets = [0, 0], sizes = [16, 8], strides = [1, 1]} : vector<16x96xf32> to vector<16x8xf32>
    %35 = arith.truncf %34 : vector<16x8xf32> to vector<16x8xbf16>
    %c0_15 = arith.constant 0 : index
    %c0_16 = arith.constant 0 : index
    %c0_17 = arith.constant 0 : index
    %36 = vector.load %arg18[%c0_15, %c0_16, %c0_17] : memref<4x16x8xbf16, #tpu.memory_space<vmem>>, vector<1x16x8xbf16>
    %37 = vector.shape_cast %36 : vector<1x16x8xbf16> to vector<16x8xbf16>
    %38 = vector.shape_cast %35 : vector<16x8xbf16> to vector<1x16x8xbf16>
    tpu.vector_store %arg18[%c0_15, %c0_16, %c0_17], %38 {strides = array<i32>} : memref<4x16x8xbf16, #tpu.memory_space<vmem>>, vector<1x16x8xbf16>,
    %39 = vector.extract_strided_slice %33 {offsets = [0, 32], sizes = [16, 8], strides = [1, 1]} : vector<16x96xf32> to vector<16x8xf32>
    %40 = arith.truncf %39 : vector<16x8xf32> to vector<16x8xbf16>
    %c0_18 = arith.constant 0 : index
    %41 = arith.index_cast %1 : i32 to index
    %c0_19 = arith.constant 0 : index
    %42 = vector.load %arg16[%c0_18, %41, %c0_19] : memref<4x32x8xbf16, #tpu.memory_space<vmem>>, vector<1x16x8xbf16>
    %43 = vector.shape_cast %42 : vector<1x16x8xbf16> to vector<16x8xbf16>
    %44 = vector.shape_cast %40 : vector<16x8xbf16> to vector<1x16x8xbf16>
    tpu.vector_store %arg16[%c0_18, %41, %c0_19], %44 {strides = array<i32>} : memref<4x32x8xbf16, #tpu.memory_space<vmem>>, vector<1x16x8xbf16>,
    %45 = vector.extract_strided_slice %33 {offsets = [0, 64], sizes = [16, 8], strides = [1, 1]} : vector<16x96xf32> to vector<16x8xf32>
    %46 = arith.truncf %45 : vector<16x8xf32> to vector<16x8xbf16>
    %c0_20 = arith.constant 0 : index
    %47 = arith.index_cast %1 : i32 to index
    %c0_21 = arith.constant 0 : index
    %48 = vector.load %arg17[%c0_20, %47, %c0_21] : memref<4x32x8xbf16, #tpu.memory_space<vmem>>, vector<1x16x8xbf16>
    %49 = vector.shape_cast %48 : vector<1x16x8xbf16> to vector<16x8xbf16>
    %50 = vector.shape_cast %46 : vector<16x8xbf16> to vector<1x16x8xbf16>
    tpu.vector_store %arg17[%c0_20, %47, %c0_21], %50 {strides = array<i32>} : memref<4x32x8xbf16, #tpu.memory_space<vmem>>, vector<1x16x8xbf16>,
    %51 = vector.extract_strided_slice %33 {offsets = [0, 8], sizes = [16, 8], strides = [1, 1]} : vector<16x96xf32> to vector<16x8xf32>
    %52 = arith.truncf %51 : vector<16x8xf32> to vector<16x8xbf16>
    %c1 = arith.constant 1 : index
    %c0_22 = arith.constant 0 : index
    %c0_23 = arith.constant 0 : index
    %53 = vector.load %arg18[%c1, %c0_22, %c0_23] : memref<4x16x8xbf16, #tpu.memory_space<vmem>>, vector<1x16x8xbf16>
    %54 = vector.shape_cast %53 : vector<1x16x8xbf16> to vector<16x8xbf16>
    %55 = vector.shape_cast %52 : vector<16x8xbf16> to vector<1x16x8xbf16>
    tpu.vector_store %arg18[%c1, %c0_22, %c0_23], %55 {strides = array<i32>} : memref<4x16x8xbf16, #tpu.memory_space<vmem>>, vector<1x16x8xbf16>,
    %56 = vector.extract_strided_slice %33 {offsets = [0, 40], sizes = [16, 8], strides = [1, 1]} : vector<16x96xf32> to vector<16x8xf32>
    %57 = arith.truncf %56 : vector<16x8xf32> to vector<16x8xbf16>
    %c1_24 = arith.constant 1 : index
    %58 = arith.index_cast %1 : i32 to index
    %c0_25 = arith.constant 0 : index
    %59 = vector.load %arg16[%c1_24, %58, %c0_25] : memref<4x32x8xbf16, #tpu.memory_space<vmem>>, vector<1x16x8xbf16>
    %60 = vector.shape_cast %59 : vector<1x16x8xbf16> to vector<16x8xbf16>
    %61 = vector.shape_cast %57 : vector<16x8xbf16> to vector<1x16x8xbf16>
    tpu.vector_store %arg16[%c1_24, %58, %c0_25], %61 {strides = array<i32>} : memref<4x32x8xbf16, #tpu.memory_space<vmem>>, vector<1x16x8xbf16>,
    %62 = vector.extract_strided_slice %33 {offsets = [0, 72], sizes = [16, 8], strides = [1, 1]} : vector<16x96xf32> to vector<16x8xf32>
    %63 = arith.truncf %62 : vector<16x8xf32> to vector<16x8xbf16>
    %c1_26 = arith.constant 1 : index
    %64 = arith.index_cast %1 : i32 to index
    %c0_27 = arith.constant 0 : index
    %65 = vector.load %arg17[%c1_26, %64, %c0_27] : memref<4x32x8xbf16, #tpu.memory_space<vmem>>, vector<1x16x8xbf16>
    %66 = vector.shape_cast %65 : vector<1x16x8xbf16> to vector<16x8xbf16>
    %67 = vector.shape_cast %63 : vector<16x8xbf16> to vector<1x16x8xbf16>
    tpu.vector_store %arg17[%c1_26, %64, %c0_27], %67 {strides = array<i32>} : memref<4x32x8xbf16, #tpu.memory_space<vmem>>, vector<1x16x8xbf16>,
    %68 = vector.extract_strided_slice %33 {offsets = [0, 16], sizes = [16, 8], strides = [1, 1]} : vector<16x96xf32> to vector<16x8xf32>
    %69 = arith.truncf %68 : vector<16x8xf32> to vector<16x8xbf16>
    %c2 = arith.constant 2 : index
    %c0_28 = arith.constant 0 : index
    %c0_29 = arith.constant 0 : index
    %70 = vector.load %arg18[%c2, %c0_28, %c0_29] : memref<4x16x8xbf16, #tpu.memory_space<vmem>>, vector<1x16x8xbf16>
    %71 = vector.shape_cast %70 : vector<1x16x8xbf16> to vector<16x8xbf16>
    %72 = vector.shape_cast %69 : vector<16x8xbf16> to vector<1x16x8xbf16>
    tpu.vector_store %arg18[%c2, %c0_28, %c0_29], %72 {strides = array<i32>} : memref<4x16x8xbf16, #tpu.memory_space<vmem>>, vector<1x16x8xbf16>,
    %73 = vector.extract_strided_slice %33 {offsets = [0, 48], sizes = [16, 8], strides = [1, 1]} : vector<16x96xf32> to vector<16x8xf32>
    %74 = arith.truncf %73 : vector<16x8xf32> to vector<16x8xbf16>
    %c2_30 = arith.constant 2 : index
    %75 = arith.index_cast %1 : i32 to index
    %c0_31 = arith.constant 0 : index
    %76 = vector.load %arg16[%c2_30, %75, %c0_31] : memref<4x32x8xbf16, #tpu.memory_space<vmem>>, vector<1x16x8xbf16>
    %77 = vector.shape_cast %76 : vector<1x16x8xbf16> to vector<16x8xbf16>
    %78 = vector.shape_cast %74 : vector<16x8xbf16> to vector<1x16x8xbf16>
    tpu.vector_store %arg16[%c2_30, %75, %c0_31], %78 {strides = array<i32>} : memref<4x32x8xbf16, #tpu.memory_space<vmem>>, vector<1x16x8xbf16>,
    %79 = vector.extract_strided_slice %33 {offsets = [0, 80], sizes = [16, 8], strides = [1, 1]} : vector<16x96xf32> to vector<16x8xf32>
    %80 = arith.truncf %79 : vector<16x8xf32> to vector<16x8xbf16>
    %c2_32 = arith.constant 2 : index
    %81 = arith.index_cast %1 : i32 to index
    %c0_33 = arith.constant 0 : index
    %82 = vector.load %arg17[%c2_32, %81, %c0_33] : memref<4x32x8xbf16, #tpu.memory_space<vmem>>, vector<1x16x8xbf16>
    %83 = vector.shape_cast %82 : vector<1x16x8xbf16> to vector<16x8xbf16>
    %84 = vector.shape_cast %80 : vector<16x8xbf16> to vector<1x16x8xbf16>
    tpu.vector_store %arg17[%c2_32, %81, %c0_33], %84 {strides = array<i32>} : memref<4x32x8xbf16, #tpu.memory_space<vmem>>, vector<1x16x8xbf16>,
    %85 = vector.extract_strided_slice %33 {offsets = [0, 24], sizes = [16, 8], strides = [1, 1]} : vector<16x96xf32> to vector<16x8xf32>
    %86 = arith.truncf %85 : vector<16x8xf32> to vector<16x8xbf16>
    %c3 = arith.constant 3 : index
    %c0_34 = arith.constant 0 : index
    %c0_35 = arith.constant 0 : index
    %87 = vector.load %arg18[%c3, %c0_34, %c0_35] : memref<4x16x8xbf16, #tpu.memory_space<vmem>>, vector<1x16x8xbf16>
    %88 = vector.shape_cast %87 : vector<1x16x8xbf16> to vector<16x8xbf16>
    %89 = vector.shape_cast %86 : vector<16x8xbf16> to vector<1x16x8xbf16>
    tpu.vector_store %arg18[%c3, %c0_34, %c0_35], %89 {strides = array<i32>} : memref<4x16x8xbf16, #tpu.memory_space<vmem>>, vector<1x16x8xbf16>,
    %90 = vector.extract_strided_slice %33 {offsets = [0, 56], sizes = [16, 8], strides = [1, 1]} : vector<16x96xf32> to vector<16x8xf32>
    %91 = arith.truncf %90 : vector<16x8xf32> to vector<16x8xbf16>
    %c3_36 = arith.constant 3 : index
    %92 = arith.index_cast %1 : i32 to index
    %c0_37 = arith.constant 0 : index
    %93 = vector.load %arg16[%c3_36, %92, %c0_37] : memref<4x32x8xbf16, #tpu.memory_space<vmem>>, vector<1x16x8xbf16>
    %94 = vector.shape_cast %93 : vector<1x16x8xbf16> to vector<16x8xbf16>
    %95 = vector.shape_cast %91 : vector<16x8xbf16> to vector<1x16x8xbf16>
    tpu.vector_store %arg16[%c3_36, %92, %c0_37], %95 {strides = array<i32>} : memref<4x32x8xbf16, #tpu.memory_space<vmem>>, vector<1x16x8xbf16>,
    %96 = vector.extract_strided_slice %33 {offsets = [0, 88], sizes = [16, 8], strides = [1, 1]} : vector<16x96xf32> to vector<16x8xf32>
    %97 = arith.truncf %96 : vector<16x8xf32> to vector<16x8xbf16>
    %c3_38 = arith.constant 3 : index
    %98 = arith.index_cast %1 : i32 to index
    %c0_39 = arith.constant 0 : index
    %99 = vector.load %arg17[%c3_38, %98, %c0_39] : memref<4x32x8xbf16, #tpu.memory_space<vmem>>, vector<1x16x8xbf16>
    %100 = vector.shape_cast %99 : vector<1x16x8xbf16> to vector<16x8xbf16>
    %101 = vector.shape_cast %97 : vector<16x8xbf16> to vector<1x16x8xbf16>
    tpu.vector_store %arg17[%c3_38, %98, %c0_39], %101 {strides = array<i32>} : memref<4x32x8xbf16, #tpu.memory_space<vmem>>, vector<1x16x8xbf16>,
    %c0_40 = arith.constant 0 : index
    %c0_41 = arith.constant 0 : index
    %c0_42 = arith.constant 0 : index
    %102 = vector.load %arg18[%c0_40, %c0_41, %c0_42] : memref<4x16x8xbf16, #tpu.memory_space<vmem>>, vector<4x16x8xbf16>
    %c0_43 = arith.constant 0 : index
    %103 = arith.index_cast %1 : i32 to index
    %c0_44 = arith.constant 0 : index
    %104 = vector.load %arg16[%c0_43, %103, %c0_44] : memref<4x32x8xbf16, #tpu.memory_space<vmem>>, vector<4x16x8xbf16>
    %c0_45 = arith.constant 0 : index
    %105 = arith.index_cast %1 : i32 to index
    %c0_46 = arith.constant 0 : index
    %106 = vector.load %arg17[%c0_45, %105, %c0_46] : memref<4x32x8xbf16, #tpu.memory_space<vmem>>, vector<4x16x8xbf16>
    %107 = tpu.iota {dimensions = array<i32: 1>} : vector<1x16x16xi32>
    %108 = tpu.iota {dimensions = array<i32: 2>} : vector<1x16x16xi32>
    %109 = arith.cmpi sge, %107, %108 : vector<1x16x16xi32>
    "tpu.trace_start"() <{level = 10 : i32, message = "hqd,hkd->hqk"}> : () -> ()
    %cst_47 = arith.constant dense<0.000000e+00> : vector<4x16x16xf32>
    %110 = tpu.matmul %102, %104, %cst_47 {dimension_numbers = #tpu.dot_dimension_numbers<[2], [2], [1], [1], [0, 0, 0, 1, 1, 1], [0], [0]>} : vector<4x16x8xbf16>, vector<4x16x8xbf16>, vector<4x16x16xf32> -> vector<4x16x16xf32>
    %cst_48 = arith.constant 0xFF800000 : f32
    "tpu.trace_stop"() : () -> ()
    %111 = vector.shape_cast %109 : vector<1x16x16xi1> to vector<1x16x16xi1>
    %112 = vector.broadcast %111 : vector<1x16x16xi1> to vector<4x16x16xi1>
    %113 = vector.broadcast %cst_48 : f32 to vector<4x16x16xf32>
    %114 = arith.select %112, %110, %113 : vector<4x16x16xi1>, vector<4x16x16xf32>
    %cst_49 = arith.constant dense<0xFF800000> : vector<4x16xf32>
    %115 = vector.multi_reduction <maximumf>, %114, %cst_49 [2] : vector<4x16x16xf32> to vector<4x16xf32>
    %116 = vector.shape_cast %115 : vector<4x16xf32> to vector<4x16x1xf32>
    %117 = vector.broadcast %116 : vector<4x16x1xf32> to vector<4x16x16xf32>
    %118 = arith.subf %114, %117 : vector<4x16x16xf32>
    %119 = math.exp %118 : vector<4x16x16xf32>
    %c0_50 = arith.constant 0 : index
    %c0_51 = arith.constant 0 : index
    %c0_52 = arith.constant 0 : index
    %120 = vector.load %arg19[%c0_50, %c0_51, %c0_52] : memref<4x16x1xf32, #tpu.memory_space<vmem>>, vector<4x16x1xf32>
    tpu.vector_store %arg19[%c0_50, %c0_51, %c0_52], %116 {strides = array<i32>} : memref<4x16x1xf32, #tpu.memory_space<vmem>>, vector<4x16x1xf32>,
    %cst_53 = arith.constant dense<0.000000e+00> : vector<4x16xf32>
    %121 = vector.multi_reduction <add>, %119, %cst_53 [2] : vector<4x16x16xf32> to vector<4x16xf32>
    %122 = vector.shape_cast %121 : vector<4x16xf32> to vector<4x16x1xf32>
    %c0_54 = arith.constant 0 : index
    %c0_55 = arith.constant 0 : index
    %c0_56 = arith.constant 0 : index
    %123 = vector.load %arg20[%c0_54, %c0_55, %c0_56] : memref<4x16x1xf32, #tpu.memory_space<vmem>>, vector<4x16x1xf32>
    tpu.vector_store %arg20[%c0_54, %c0_55, %c0_56], %122 {strides = array<i32>} : memref<4x16x1xf32, #tpu.memory_space<vmem>>, vector<4x16x1xf32>,
    %124 = arith.truncf %119 : vector<4x16x16xf32> to vector<4x16x16xbf16>
    "tpu.trace_start"() <{level = 10 : i32, message = "hqk,hkd->hqd"}> : () -> ()
    %cst_57 = arith.constant dense<0.000000e+00> : vector<4x16x8xf32>
    %125 = tpu.matmul %124, %106, %cst_57 {dimension_numbers = #tpu.dot_dimension_numbers<[2], [1], [1], [2], [0, 0, 0, 1, 1, 2], [0], [0]>} : vector<4x16x16xbf16>, vector<4x16x8xbf16>, vector<4x16x8xf32> -> vector<4x16x8xf32>
    "tpu.trace_stop"() : () -> ()
    %c0_58 = arith.constant 0 : index
    %c0_59 = arith.constant 0 : index
    %c0_60 = arith.constant 0 : index
    %126 = vector.load %arg21[%c0_58, %c0_59, %c0_60] : memref<4x16x8xf32, #tpu.memory_space<vmem>>, vector<4x16x8xf32>
    tpu.vector_store %arg21[%c0_58, %c0_59, %c0_60], %125 {strides = array<i32>} : memref<4x16x8xf32, #tpu.memory_space<vmem>>, vector<4x16x8xf32>,
    %c0_i32 = arith.constant 0 : i32
    %127 = arith.subi %arg1, %c0_i32 : i32
    %c1_i32 = arith.constant 1 : i32
    %c1_i32_61 = arith.constant 1 : i32
    %128 = arith.subi %c1_i32, %c1_i32_61 : i32
    %129 = arith.addi %127, %128 : i32
    %c1_i32_62 = arith.constant 1 : i32
    %130 = arith.divsi %129, %c1_i32_62 : i32
    %c1_i32_63 = arith.constant 1 : i32
    %c0_i32_64 = arith.constant 0 : i32
    %c0_i32_65 = arith.constant 0 : i32
    %131 = arith.subi %130, %c0_i32_65 : i32
    %132 = arith.addi %c0_i32_65, %131 : i32
    %c1_i32_66 = arith.constant 1 : i32
    scf.for %arg23 = %c0_i32_65 to %132 step %c1_i32_66  : i32 {
      %214 = arith.muli %arg23, %c1_i32_63 : i32
      %215 = arith.addi %c0_i32_64, %214 : i32
      %c16_i32_111 = arith.constant 16 : i32
      %216 = arith.muli %215, %c16_i32_111 : i32
      %217 = tpu.assume_multiple %216, 16 : i32
      %c0_112 = arith.constant 0 : index
      %218 = arith.index_cast %217 : i32 to index
      %c0_113 = arith.constant 0 : index
      %219 = vector.load %arg16[%c0_112, %218, %c0_113] : memref<4x32x8xbf16, #tpu.memory_space<vmem>>, vector<4x16x8xbf16>
      %c0_114 = arith.constant 0 : index
      %220 = arith.index_cast %217 : i32 to index
      %c0_115 = arith.constant 0 : index
      %221 = vector.load %arg17[%c0_114, %220, %c0_115] : memref<4x32x8xbf16, #tpu.memory_space<vmem>>, vector<4x16x8xbf16>
      %c0_116 = arith.constant 0 : index
      %c0_117 = arith.constant 0 : index
      %c0_118 = arith.constant 0 : index
      %222 = vector.load %arg18[%c0_116, %c0_117, %c0_118] : memref<4x16x8xbf16, #tpu.memory_space<vmem>>, vector<4x16x8xbf16>
      "tpu.trace_start"() <{level = 10 : i32, message = "hqd,hkd->hqk"}> : () -> ()
      %cst_119 = arith.constant dense<0.000000e+00> : vector<4x16x16xf32>
      %223 = tpu.matmul %222, %219, %cst_119 {dimension_numbers = #tpu.dot_dimension_numbers<[2], [2], [1], [1], [0, 0, 0, 1, 1, 1], [0], [0]>} : vector<4x16x8xbf16>, vector<4x16x8xbf16>, vector<4x16x16xf32> -> vector<4x16x16xf32>
      "tpu.trace_stop"() : () -> ()
      %c0_120 = arith.constant 0 : index
      %c0_121 = arith.constant 0 : index
      %c0_122 = arith.constant 0 : index
      %224 = vector.load %arg19[%c0_120, %c0_121, %c0_122] : memref<4x16x1xf32, #tpu.memory_space<vmem>>, vector<4x16x1xf32>
      %cst_123 = arith.constant dense<0xFF800000> : vector<4x16xf32>
      %225 = vector.multi_reduction <maximumf>, %223, %cst_123 [2] : vector<4x16x16xf32> to vector<4x16xf32>
      %226 = vector.shape_cast %225 : vector<4x16xf32> to vector<4x16x1xf32>
      %227 = arith.maximumf %224, %226 : vector<4x16x1xf32>
      %228 = arith.subf %224, %227 : vector<4x16x1xf32>
      %229 = math.exp %228 : vector<4x16x1xf32>
      %230 = vector.broadcast %227 : vector<4x16x1xf32> to vector<4x16x16xf32>
      %231 = arith.subf %223, %230 : vector<4x16x16xf32>
      %232 = math.exp %231 : vector<4x16x16xf32>
      %c0_124 = arith.constant 0 : index
      %c0_125 = arith.constant 0 : index
      %c0_126 = arith.constant 0 : index
      %233 = vector.load %arg20[%c0_124, %c0_125, %c0_126] : memref<4x16x1xf32, #tpu.memory_space<vmem>>, vector<4x16x1xf32>
      %234 = arith.mulf %229, %233 : vector<4x16x1xf32>
      %cst_127 = arith.constant dense<0.000000e+00> : vector<4x16xf32>
      %235 = vector.multi_reduction <add>, %232, %cst_127 [2] : vector<4x16x16xf32> to vector<4x16xf32>
      %236 = vector.shape_cast %235 : vector<4x16xf32> to vector<4x16x1xf32>
      %237 = arith.addf %234, %236 : vector<4x16x1xf32>
      %c0_128 = arith.constant 0 : index
      %c0_129 = arith.constant 0 : index
      %c0_130 = arith.constant 0 : index
      %238 = vector.load %arg20[%c0_128, %c0_129, %c0_130] : memref<4x16x1xf32, #tpu.memory_space<vmem>>, vector<4x16x1xf32>
      tpu.vector_store %arg20[%c0_128, %c0_129, %c0_130], %237 {strides = array<i32>} : memref<4x16x1xf32, #tpu.memory_space<vmem>>, vector<4x16x1xf32>,
      %c0_131 = arith.constant 0 : index
      %c0_132 = arith.constant 0 : index
      %c0_133 = arith.constant 0 : index
      %239 = vector.load %arg21[%c0_131, %c0_132, %c0_133] : memref<4x16x8xf32, #tpu.memory_space<vmem>>, vector<4x16x8xf32>
      %240 = vector.broadcast %229 : vector<4x16x1xf32> to vector<4x16x8xf32>
      %241 = arith.mulf %240, %239 : vector<4x16x8xf32>
      %242 = arith.truncf %232 : vector<4x16x16xf32> to vector<4x16x16xbf16>
      "tpu.trace_start"() <{level = 10 : i32, message = "hqk,hkd->hqd"}> : () -> ()
      %cst_134 = arith.constant dense<0.000000e+00> : vector<4x16x8xf32>
      %243 = tpu.matmul %242, %221, %cst_134 {dimension_numbers = #tpu.dot_dimension_numbers<[2], [1], [1], [2], [0, 0, 0, 1, 1, 2], [0], [0]>} : vector<4x16x16xbf16>, vector<4x16x8xbf16>, vector<4x16x8xf32> -> vector<4x16x8xf32>
      "tpu.trace_stop"() : () -> ()
      %244 = arith.addf %241, %243 : vector<4x16x8xf32>
      %c0_135 = arith.constant 0 : index
      %c0_136 = arith.constant 0 : index
      %c0_137 = arith.constant 0 : index
      %245 = vector.load %arg21[%c0_135, %c0_136, %c0_137] : memref<4x16x8xf32, #tpu.memory_space<vmem>>, vector<4x16x8xf32>
      tpu.vector_store %arg21[%c0_135, %c0_136, %c0_137], %244 {strides = array<i32>} : memref<4x16x8xf32, #tpu.memory_space<vmem>>, vector<4x16x8xf32>,
      %c0_138 = arith.constant 0 : index
      %c0_139 = arith.constant 0 : index
      %c0_140 = arith.constant 0 : index
      %246 = vector.load %arg19[%c0_138, %c0_139, %c0_140] : memref<4x16x1xf32, #tpu.memory_space<vmem>>, vector<4x16x1xf32>
      tpu.vector_store %arg19[%c0_138, %c0_139, %c0_140], %227 {strides = array<i32>} : memref<4x16x1xf32, #tpu.memory_space<vmem>>, vector<4x16x1xf32>,
    }
    %c0_67 = arith.constant 0 : index
    %c0_68 = arith.constant 0 : index
    %c0_69 = arith.constant 0 : index
    %133 = vector.load %arg21[%c0_67, %c0_68, %c0_69] : memref<4x16x8xf32, #tpu.memory_space<vmem>>, vector<4x16x8xf32>
    %c0_70 = arith.constant 0 : index
    %c0_71 = arith.constant 0 : index
    %c0_72 = arith.constant 0 : index
    %134 = vector.load %arg20[%c0_70, %c0_71, %c0_72] : memref<4x16x1xf32, #tpu.memory_space<vmem>>, vector<4x16x1xf32>
    %135 = tpu.reciprocal %134 {approx = true} : vector<4x16x1xf32> -> vector<4x16x1xf32>
    %136 = vector.broadcast %135 : vector<4x16x1xf32> to vector<4x16x8xf32>
    %137 = arith.mulf %133, %136 : vector<4x16x8xf32>
    %138 = vector.extract_strided_slice %137 {offsets = [0, 0, 0], sizes = [1, 16, 8], strides = [1, 1, 1]} : vector<4x16x8xf32> to vector<1x16x8xf32>
    %139 = vector.shape_cast %138 : vector<1x16x8xf32> to vector<16x8xf32>
    %140 = arith.truncf %139 : vector<16x8xf32> to vector<16x8xbf16>
    %c0_73 = arith.constant 0 : index
    %c0_74 = arith.constant 0 : index
    %141 = vector.load %arg22[%c0_73, %c0_74] : memref<16x32xbf16, #tpu.memory_space<vmem>>, vector<16x8xbf16>
    tpu.vector_store %arg22[%c0_73, %c0_74], %140 {strides = array<i32>} : memref<16x32xbf16, #tpu.memory_space<vmem>>, vector<16x8xbf16>,
    %142 = vector.extract_strided_slice %137 {offsets = [1, 0, 0], sizes = [1, 16, 8], strides = [1, 1, 1]} : vector<4x16x8xf32> to vector<1x16x8xf32>
    %143 = vector.shape_cast %142 : vector<1x16x8xf32> to vector<16x8xf32>
    %144 = arith.truncf %143 : vector<16x8xf32> to vector<16x8xbf16>
    %c0_75 = arith.constant 0 : index
    %c8 = arith.constant 8 : index
    %145 = vector.load %arg22[%c0_75, %c8] : memref<16x32xbf16, #tpu.memory_space<vmem>>, vector<16x8xbf16>
    tpu.vector_store %arg22[%c0_75, %c8], %144 {strides = array<i32>} : memref<16x32xbf16, #tpu.memory_space<vmem>>, vector<16x8xbf16>,
    %146 = vector.extract_strided_slice %137 {offsets = [2, 0, 0], sizes = [1, 16, 8], strides = [1, 1, 1]} : vector<4x16x8xf32> to vector<1x16x8xf32>
    %147 = vector.shape_cast %146 : vector<1x16x8xf32> to vector<16x8xf32>
    %148 = arith.truncf %147 : vector<16x8xf32> to vector<16x8xbf16>
    %c0_76 = arith.constant 0 : index
    %c16 = arith.constant 16 : index
    %149 = vector.load %arg22[%c0_76, %c16] : memref<16x32xbf16, #tpu.memory_space<vmem>>, vector<16x8xbf16>
    tpu.vector_store %arg22[%c0_76, %c16], %148 {strides = array<i32>} : memref<16x32xbf16, #tpu.memory_space<vmem>>, vector<16x8xbf16>,
    %150 = vector.extract_strided_slice %137 {offsets = [3, 0, 0], sizes = [1, 16, 8], strides = [1, 1, 1]} : vector<4x16x8xf32> to vector<1x16x8xf32>
    %151 = vector.shape_cast %150 : vector<1x16x8xf32> to vector<16x8xf32>
    %152 = arith.truncf %151 : vector<16x8xf32> to vector<16x8xbf16>
    %c0_77 = arith.constant 0 : index
    %c24 = arith.constant 24 : index
    %153 = vector.load %arg22[%c0_77, %c24] : memref<16x32xbf16, #tpu.memory_space<vmem>>, vector<16x8xbf16>
    tpu.vector_store %arg22[%c0_77, %c24], %152 {strides = array<i32>} : memref<16x32xbf16, #tpu.memory_space<vmem>>, vector<16x8xbf16>,
    %c0_78 = arith.constant 0 : index
    %c0_79 = arith.constant 0 : index
    %154 = vector.load %arg22[%c0_78, %c0_79] : memref<16x32xbf16, #tpu.memory_space<vmem>>, vector<16x32xbf16>
    %c0_80 = arith.constant 0 : index
    %c0_81 = arith.constant 0 : index
    %155 = vector.load %arg7[%c0_80, %c0_81] : memref<32x32xbf16, #tpu.memory_space<vmem>>, vector<32x32xbf16>
    %cst_82 = arith.constant dense<0.000000e+00> : vector<16x32xf32>
    %156 = tpu.matmul %154, %155, %cst_82 {dimension_numbers = #tpu.dot_dimension_numbers<[1], [0], [0], [1], [0, 0, 1, 1], [], []>} : vector<16x32xbf16>, vector<32x32xbf16>, vector<16x32xf32> -> vector<16x32xf32>
    %c0_83 = arith.constant 0 : index
    %c0_84 = arith.constant 0 : index
    %157 = vector.load %arg8[%c0_83, %c0_84] : memref<1x32xf32, #tpu.memory_space<vmem>>, vector<1x32xf32>
    %158 = vector.broadcast %157 : vector<1x32xf32> to vector<16x32xf32>
    %159 = arith.addf %156, %158 : vector<16x32xf32>
    %160 = arith.addf %3, %159 : vector<16x32xf32>
    %c0_85 = arith.constant 0 : index
    %c0_86 = arith.constant 0 : index
    %161 = vector.load %arg9[%c0_85, %c0_86] : memref<1x32xf32, #tpu.memory_space<vmem>>, vector<1x32xf32>
    %c0_87 = arith.constant 0 : index
    %c0_88 = arith.constant 0 : index
    %162 = vector.load %arg10[%c0_87, %c0_88] : memref<1x32xf32, #tpu.memory_space<vmem>>, vector<1x32xf32>
    %cst_89 = arith.constant dense<0.000000e+00> : vector<16xf32>
    %163 = vector.multi_reduction <add>, %160, %cst_89 [1] : vector<16x32xf32> to vector<16xf32>
    %164 = vector.shape_cast %163 : vector<16xf32> to vector<16x1xf32>
    %cst_90 = arith.constant 3.200000e+01 : f32
    %165 = vector.broadcast %cst_90 : f32 to vector<16x1xf32>
    %166 = arith.divf %164, %165 : vector<16x1xf32>
    %167 = vector.broadcast %166 : vector<16x1xf32> to vector<16x32xf32>
    %168 = arith.subf %160, %167 : vector<16x32xf32>
    %169 = arith.mulf %168, %168 : vector<16x32xf32>
    %cst_91 = arith.constant dense<0.000000e+00> : vector<16xf32>
    %170 = vector.multi_reduction <add>, %169, %cst_91 [1] : vector<16x32xf32> to vector<16xf32>
    %171 = vector.shape_cast %170 : vector<16xf32> to vector<16x1xf32>
    %cst_92 = arith.constant 3.200000e+01 : f32
    %172 = vector.broadcast %cst_92 : f32 to vector<16x1xf32>
    %173 = arith.divf %171, %172 : vector<16x1xf32>
    %174 = vector.broadcast %166 : vector<16x1xf32> to vector<16x32xf32>
    %175 = arith.subf %160, %174 : vector<16x32xf32>
    %cst_93 = arith.constant 9.99999974E-6 : f32
    %176 = vector.broadcast %cst_93 : f32 to vector<16x1xf32>
    %177 = arith.addf %173, %176 : vector<16x1xf32>
    %178 = math.rsqrt %177 : vector<16x1xf32>
    %179 = vector.broadcast %178 : vector<16x1xf32> to vector<16x32xf32>
    %180 = arith.mulf %175, %179 : vector<16x32xf32>
    %181 = vector.broadcast %161 : vector<1x32xf32> to vector<16x32xf32>
    %182 = arith.mulf %180, %181 : vector<16x32xf32>
    %183 = vector.broadcast %162 : vector<1x32xf32> to vector<16x32xf32>
    %184 = arith.addf %182, %183 : vector<16x32xf32>
    %185 = arith.truncf %184 : vector<16x32xf32> to vector<16x32xbf16>
    %c0_94 = arith.constant 0 : index
    %c0_95 = arith.constant 0 : index
    %186 = vector.load %arg11[%c0_94, %c0_95] : memref<32x128xbf16, #tpu.memory_space<vmem>>, vector<32x128xbf16>
    %cst_96 = arith.constant dense<0.000000e+00> : vector<16x128xf32>
    %187 = tpu.matmul %185, %186, %cst_96 {dimension_numbers = #tpu.dot_dimension_numbers<[1], [0], [0], [1], [0, 0, 1, 1], [], []>} : vector<16x32xbf16>, vector<32x128xbf16>, vector<16x128xf32> -> vector<16x128xf32>
    %c0_97 = arith.constant 0 : index
    %c0_98 = arith.constant 0 : index
    %188 = vector.load %arg12[%c0_97, %c0_98] : memref<1x128xf32, #tpu.memory_space<vmem>>, vector<1x128xf32>
    %189 = vector.broadcast %188 : vector<1x128xf32> to vector<16x128xf32>
    %190 = arith.addf %187, %189 : vector<16x128xf32>
    %cst_99 = arith.constant 5.000000e-01 : f32
    %191 = vector.broadcast %cst_99 : f32 to vector<16x128xf32>
    %192 = arith.mulf %191, %190 : vector<16x128xf32>
    %cst_100 = arith.constant 4.471500e-02 : f32
    %193 = vector.broadcast %cst_100 : f32 to vector<16x128xf32>
    %194 = arith.mulf %193, %190 : vector<16x128xf32>
    %195 = arith.mulf %194, %190 : vector<16x128xf32>
    %196 = arith.mulf %195, %190 : vector<16x128xf32>
    %197 = arith.addf %190, %196 : vector<16x128xf32>
    %cst_101 = arith.constant 0.797884583 : f32
    %198 = vector.broadcast %cst_101 : f32 to vector<16x128xf32>
    %199 = arith.mulf %198, %197 : vector<16x128xf32>
    %200 = math.tanh %199 : vector<16x128xf32>
    %cst_102 = arith.constant 1.000000e+00 : f32
    %201 = vector.broadcast %cst_102 : f32 to vector<16x128xf32>
    %202 = arith.addf %201, %200 : vector<16x128xf32>
    %203 = arith.mulf %192, %202 : vector<16x128xf32>
    %204 = arith.truncf %203 : vector<16x128xf32> to vector<16x128xbf16>
    %c0_103 = arith.constant 0 : index
    %c0_104 = arith.constant 0 : index
    %205 = vector.load %arg13[%c0_103, %c0_104] : memref<128x32xbf16, #tpu.memory_space<vmem>>, vector<128x32xbf16>
    %cst_105 = arith.constant dense<0.000000e+00> : vector<16x32xf32>
    %206 = tpu.matmul %204, %205, %cst_105 {dimension_numbers = #tpu.dot_dimension_numbers<[1], [0], [0], [1], [0, 0, 1, 1], [], []>} : vector<16x128xbf16>, vector<128x32xbf16>, vector<16x32xf32> -> vector<16x32xf32>
    %c0_106 = arith.constant 0 : index
    %c0_107 = arith.constant 0 : index
    %207 = vector.load %arg14[%c0_106, %c0_107] : memref<1x32xf32, #tpu.memory_space<vmem>>, vector<1x32xf32>
    %208 = vector.broadcast %207 : vector<1x32xf32> to vector<16x32xf32>
    %209 = arith.addf %206, %208 : vector<16x32xf32>
    %210 = arith.addf %160, %209 : vector<16x32xf32>
    %c0_108 = arith.constant 0 : index
    %c0_109 = arith.constant 0 : index
    %c0_110 = arith.constant 0 : index
    %211 = vector.load %arg15[%c0_108, %c0_109, %c0_110] : memref<1x16x32xf32, #tpu.memory_space<vmem>>, vector<1x16x32xf32>
    %212 = vector.shape_cast %211 : vector<1x16x32xf32> to vector<16x32xf32>
    %213 = vector.shape_cast %210 : vector<16x32xf32> to vector<1x16x32xf32>
    tpu.vector_store %arg15[%c0_108, %c0_109, %c0_110], %213 {strides = array<i32>} : memref<1x16x32xf32, #tpu.memory_space<vmem>>, vector<1x16x32xf32>,
    return
  }
  func.func @transform_0(%arg0: i32, %arg1: i32) -> (i32, i32, i32) {
    %c0_i32 = arith.constant 0 : i32
    %c0_i32_0 = arith.constant 0 : i32
    return %arg0, %arg1, %c0_i32 : i32, i32, i32
  }
  func.func @transform_1(%arg0: i32, %arg1: i32) -> (i32, i32) {
    %c0_i32 = arith.constant 0 : i32
    %c0_i32_0 = arith.constant 0 : i32
    %c0_i32_1 = arith.constant 0 : i32
    return %c0_i32, %c0_i32_0 : i32, i32
  }
  func.func @transform_2(%arg0: i32, %arg1: i32) -> (i32, i32) {
    %c0_i32 = arith.constant 0 : i32
    %c0_i32_0 = arith.constant 0 : i32
    %c0_i32_1 = arith.constant 0 : i32
    return %c0_i32, %c0_i32_0 : i32, i32
  }
  func.func @transform_3(%arg0: i32, %arg1: i32) -> (i32, i32) {
    %c0_i32 = arith.constant 0 : i32
    %c0_i32_0 = arith.constant 0 : i32
    %c0_i32_1 = arith.constant 0 : i32
    return %c0_i32, %c0_i32_0 : i32, i32
  }
  func.func @transform_4(%arg0: i32, %arg1: i32) -> (i32, i32) {
    %c0_i32 = arith.constant 0 : i32
    %c0_i32_0 = arith.constant 0 : i32
    %c0_i32_1 = arith.constant 0 : i32
    return %c0_i32, %c0_i32_0 : i32, i32
  }
  func.func @transform_5(%arg0: i32, %arg1: i32) -> (i32, i32) {
    %c0_i32 = arith.constant 0 : i32
    %c0_i32_0 = arith.constant 0 : i32
    %c0_i32_1 = arith.constant 0 : i32
    return %c0_i32, %c0_i32_0 : i32, i32
  }
  func.func @transform_6(%arg0: i32, %arg1: i32) -> (i32, i32) {
    %c0_i32 = arith.constant 0 : i32
    %c0_i32_0 = arith.constant 0 : i32
    %c0_i32_1 = arith.constant 0 : i32
    return %c0_i32, %c0_i32_0 : i32, i32
  }
  func.func @transform_7(%arg0: i32, %arg1: i32) -> (i32, i32) {
    %c0_i32 = arith.constant 0 : i32
    %c0_i32_0 = arith.constant 0 : i32
    %c0_i32_1 = arith.constant 0 : i32
    return %c0_i32, %c0_i32_0 : i32, i32
  }
  func.func @transform_8(%arg0: i32, %arg1: i32) -> (i32, i32) {
    %c0_i32 = arith.constant 0 : i32
    %c0_i32_0 = arith.constant 0 : i32
    %c0_i32_1 = arith.constant 0 : i32
    return %c0_i32, %c0_i32_0 : i32, i32
  }
  func.func @transform_9(%arg0: i32, %arg1: i32) -> (i32, i32) {
    %c0_i32 = arith.constant 0 : i32
    %c0_i32_0 = arith.constant 0 : i32
    %c0_i32_1 = arith.constant 0 : i32
    return %c0_i32, %c0_i32_0 : i32, i32
  }
  func.func @transform_10(%arg0: i32, %arg1: i32) -> (i32, i32) {
    %c0_i32 = arith.constant 0 : i32
    %c0_i32_0 = arith.constant 0 : i32
    %c0_i32_1 = arith.constant 0 : i32
    return %c0_i32, %c0_i32_0 : i32, i32
  }
  func.func @transform_11(%arg0: i32, %arg1: i32) -> (i32, i32) {
    %c0_i32 = arith.constant 0 : i32
    %c0_i32_0 = arith.constant 0 : i32
    %c0_i32_1 = arith.constant 0 : i32
    return %c0_i32, %c0_i32_0 : i32, i32
  }
  func.func @transform_12(%arg0: i32, %arg1: i32) -> (i32, i32) {
    %c0_i32 = arith.constant 0 : i32
    %c0_i32_0 = arith.constant 0 : i32
    %c0_i32_1 = arith.constant 0 : i32
    return %c0_i32, %c0_i32_0 : i32, i32
  }
  func.func @transform_13(%arg0: i32, %arg1: i32) -> (i32, i32, i32) {
    %c0_i32 = arith.constant 0 : i32
    %c0_i32_0 = arith.constant 0 : i32
    return %arg0, %arg1, %c0_i32 : i32, i32, i32
  }
}

</mosaic_0001>

<llo_original>
// kernel: tpu_custom_call.1
$region0: #{tpu_custom_call.1}
  #allocation0 [shape = 'u32[]', space=smem, size = 0x4, offset = 0x4, fixed_abs, tag = 'smem constant byte address 0x4 - core index']
  #allocation1 [shape = 'u32[144,128]{1,0:T(1,128)}', space=vmem, size = 0x12000, scoped, tag = 'internal scratch']
  #allocation2 [shape = 'bf16[4,32,8]{2,1,0:T(16,128)(2,1)}', space=vmem, size = 0x8000, scoped, tag = 'scratch operand']
  #allocation3 [shape = 'bf16[4,32,8]{2,1,0:T(16,128)(2,1)}', space=vmem, size = 0x8000, scoped, tag = 'scratch operand']
  #allocation4 [shape = 'bf16[4,16,8]{2,1,0:T(16,128)(2,1)}', space=vmem, size = 0x4000, scoped, tag = 'scratch operand']
  #allocation5 [shape = 'f32[4,16,1]{2,1,0:T(8,128)}', space=vmem, size = 0x8000, scoped, tag = 'scratch operand']
  #allocation6 [shape = 'f32[4,16,1]{2,1,0:T(8,128)}', space=vmem, size = 0x8000, scoped, tag = 'scratch operand']
  #allocation7 [shape = 'f32[4,16,8]{2,1,0:T(8,128)}', space=vmem, size = 0x8000, scoped, tag = 'scratch operand']
  #allocation8 [shape = 'bf16[16,32]{1,0:T(16,128)(2,1)}', space=vmem, size = 0x1000, scoped, tag = 'scratch operand']
  %s0 = inlined_call_operand.hbm [shape: f32[2,32,32], index: 0, kind: input, shape index: {}, may-alias: {0,13}]
  %s1 = inlined_call_operand.vmem [shape: f32[1,32], index: 1, kind: input, shape index: {}]
  %s2 = inlined_call_operand.vmem [shape: f32[1,32], index: 2, kind: input, shape index: {}]
  %s3 = inlined_call_operand.vmem [shape: bf16[32,96], index: 3, kind: input, shape index: {}]
  %s4 = inlined_call_operand.vmem [shape: f32[1,96], index: 4, kind: input, shape index: {}]
  %s5 = inlined_call_operand.vmem [shape: bf16[32,32], index: 5, kind: input, shape index: {}]
  %s6 = inlined_call_operand.vmem [shape: f32[1,32], index: 6, kind: input, shape index: {}]
  %s7 = inlined_call_operand.vmem [shape: f32[1,32], index: 7, kind: input, shape index: {}]
  %s8 = inlined_call_operand.vmem [shape: f32[1,32], index: 8, kind: input, shape index: {}]
  %s9 = inlined_call_operand.vmem [shape: bf16[32,128], index: 9, kind: input, shape index: {}]
  %s10 = inlined_call_operand.vmem [shape: f32[1,128], index: 10, kind: input, shape index: {}]
  %s11 = inlined_call_operand.vmem [shape: bf16[128,32], index: 11, kind: input, shape index: {}]
  %s12 = inlined_call_operand.vmem [shape: f32[1,32], index: 12, kind: input, shape index: {}]
  %s13 = inlined_call_operand.hbm [shape: f32[2,32,32], index: 13, kind: output, shape index: {}, may-alias: {0,13}]
  %s14 = sld [smem:[#allocation0]]
  $region96: #{tpu_custom_call.1} parent=0
    _
  %s16 = ssub.s32 1, %s14
  %s17 = scalar_select 0, %s16, %s14
  $region1: #{tpu_custom_call.1} parent=0
    #allocation9 [shape = 'u8[16384]{0}', space=vmem, size = 0x4000, scoped, tag = 'input window, operand 0']
    #allocation10 [shape = 's32[2]{0}', space=sflag, size = 0x8, scoped, tag = 'scoped memory for tpu_custom_call.1']
    #allocation11 [shape = 's32[2]{0}', space=sflag, size = 0x8, scoped, tag = 'scoped memory for tpu_custom_call.1']
    #allocation12 [shape = 'u8[16384]{0}', space=vmem, size = 0x4000, scoped, tag = 'output window, operand 0']
    %18 = vsyncpa [#allocation10], 0
    %s19 = scalar_lea.sflag [#allocation10], 1
    %20 = vsyncpa %s19, 0
    %21 = vsyncpa [#allocation11], 0
    %s22 = scalar_lea.sflag [#allocation11], 1
    %23 = vsyncpa %s22, 0
    loop: start=0, step=1, limit=6
    $region2: #{tpu_custom_call.1} parent=1 // loop_pre_header
      _
    $region3: #{tpu_custom_call.1} parent=1 // loop_header
      %s25 = sphi 0, %s29
      %p26 = scmp.ge.s32.totalorder %s25, 6
      %s32 = sphi 0, %s44
      %s33 = sphi 0, %s40
      %s34 = sphi 0, %s32
      %s35 = sphi 0, %s33
      %s36 = sphi 0, %s34
      %s37 = sphi 0, %s35
      %s49 = sphi 0, %s51
      %s52 = sphi 0, %s49
      %s53 = sphi 0, %s52
      %s69 = sphi 0, %s53
      %s73 = sphi 0, %s73
      %s75 = sphi 0, %s73
      %s76 = sphi 0, %s75
      %s90 = sphi 0, %s76
      %s94 = sphi 0, %s94
      %s96 = sphi 0, %s94
      %s97 = sphi 0, %s96
      %s111 = sphi 0, %s97
      %s115 = sphi 0, %s115
      %s117 = sphi 0, %s115
      %s118 = sphi 0, %s117
      %s132 = sphi 0, %s118
      %s136 = sphi 0, %s136
      %s138 = sphi 0, %s136
      %s139 = sphi 0, %s138
      %s153 = sphi 0, %s139
      %s157 = sphi 0, %s157
      %s159 = sphi 0, %s157
      %s160 = sphi 0, %s159
      %s174 = sphi 0, %s160
      %s178 = sphi 0, %s178
      %s180 = sphi 0, %s178
      %s181 = sphi 0, %s180
      %s195 = sphi 0, %s181
      %s199 = sphi 0, %s199
      %s201 = sphi 0, %s199
      %s202 = sphi 0, %s201
      %s216 = sphi 0, %s202
      %s220 = sphi 0, %s220
      %s222 = sphi 0, %s220
      %s223 = sphi 0, %s222
      %s237 = sphi 0, %s223
      %s241 = sphi 0, %s241
      %s243 = sphi 0, %s241
      %s244 = sphi 0, %s243
      %s258 = sphi 0, %s244
      %s262 = sphi 0, %s262
      %s264 = sphi 0, %s262
      %s265 = sphi 0, %s264
      %s279 = sphi 0, %s265
      %s283 = sphi 0, %s283
      %s285 = sphi 0, %s283
      %s286 = sphi 0, %s285
      %s300 = sphi 0, %s286
      %s304 = sphi 0, %s304
      %s306 = sphi 0, %s304
      %s307 = sphi 0, %s306
      %s321 = sphi 0, %s307
      %s329 = sphi 0, %s331
      %s332 = sphi 0, %s329
      %s333 = sphi 0, %s332
      %s349 = sphi 0, %s333
    $region4: #{tpu_custom_call.1} parent=1 // loop_header_branch
      %28 = sbr.rel (%p26) target = $region8
    $region5: #{tpu_custom_call.1} parent=1 // loop_body
      %s30 = ssub.s32 %s25, 1
      %s31 = ssub.s32 %s25, 2
      %s38 = sadd.s32 1, %s33
      %p39 = scmp.ge.s32.totalorder %s38, 2
      %s40 = scalar_select %p39, 0, %s38
      %s41 = sadd.s32 1, %s32
      %s42 = scalar_select %p39, %s41, %s32
      %p43 = scmp.ge.s32.totalorder %s42, 2
      %s44 = scalar_select %p43, 0, %s42
      %s45 = ssub.s32 %s32, %s44
      %s46 = ssub.s32 %s33, %s40
      %s47 = sor.u32 %s45, %s46
      %p48 = scmp.eq.s32.totalorder %s47, 0
      %s50 = sadd.s32 %s49, 1
      %s51 = scalar_select %p48, %s49, %s50
      %p54 = pneg %p48
      %p55 = scmp.eq.s32.totalorder %s25, 3
      %p56 = por %p54, %p55
      %p57 = scmp.ne.s32.totalorder %s49, %s52
      %p58 = scmp.eq.s32.totalorder %s25, 0
      %p59 = por %p57, %p58
      %p60 = scmp.ne.s32.totalorder %s49, %s52
      %p61 = scmp.eq.s32.totalorder %s30, 3
      %p62 = por %p60, %p61
      %p63 = scmp.ne.s32.totalorder %s52, %s53
      %p64 = scmp.eq.s32.totalorder %s30, 0
      %p65 = por %p63, %p64
      %p66 = scmp.ne.s32.totalorder %s52, %s53
      %p67 = scmp.eq.s32.totalorder %s31, 3
      %p68 = por %p66, %p67
      %p70 = scmp.ne.s32.totalorder %s53, %s69
      %p71 = scmp.eq.s32.totalorder %s31, 0
      %p72 = por %p70, %p71
      %s74 = sadd.s32 %s73, 1
      %p77 = scmp.eq.s32.totalorder %s25, 3
      %p78 = scmp.ne.s32.totalorder %s73, %s75
      %p79 = scmp.eq.s32.totalorder %s25, 0
      %p80 = por %p78, %p79
      %p81 = scmp.ne.s32.totalorder %s73, %s75
      %p82 = scmp.eq.s32.totalorder %s30, 3
      %p83 = por %p81, %p82
      %p84 = scmp.ne.s32.totalorder %s75, %s76
      %p85 = scmp.eq.s32.totalorder %s30, 0
      %p86 = por %p84, %p85
      %p87 = scmp.ne.s32.totalorder %s75, %s76
      %p88 = scmp.eq.s32.totalorder %s31, 3
      %p89 = por %p87, %p88
      %p91 = scmp.ne.s32.totalorder %s76, %s90
      %p92 = scmp.eq.s32.totalorder %s31, 0
      %p93 = por %p91, %p92
      %s95 = sadd.s32 %s94, 1
      %p98 = scmp.eq.s32.totalorder %s25, 3
      %p99 = scmp.ne.s32.totalorder %s94, %s96
      %p100 = scmp.eq.s32.totalorder %s25, 0
      %p101 = por %p99, %p100
      %p102 = scmp.ne.s32.totalorder %s94, %s96
      %p103 = scmp.eq.s32.totalorder %s30, 3
      %p104 = por %p102, %p103
      %p105 = scmp.ne.s32.totalorder %s96, %s97
      %p106 = scmp.eq.s32.totalorder %s30, 0
      %p107 = por %p105, %p106
      %p108 = scmp.ne.s32.totalorder %s96, %s97
      %p109 = scmp.eq.s32.totalorder %s31, 3
      %p110 = por %p108, %p109
      %p112 = scmp.ne.s32.totalorder %s97, %s111
      %p113 = scmp.eq.s32.totalorder %s31, 0
      %p114 = por %p112, %p113
      %s116 = sadd.s32 %s115, 1
      %p119 = scmp.eq.s32.totalorder %s25, 3
      %p120 = scmp.ne.s32.totalorder %s115, %s117
      %p121 = scmp.eq.s32.totalorder %s25, 0
      %p122 = por %p120, %p121
      %p123 = scmp.ne.s32.totalorder %s115, %s117
      %p124 = scmp.eq.s32.totalorder %s30, 3
      %p125 = por %p123, %p124
      %p126 = scmp.ne.s32.totalorder %s117, %s118
      %p127 = scmp.eq.s32.totalorder %s30, 0
      %p128 = por %p126, %p127
      %p129 = scmp.ne.s32.totalorder %s117, %s118
      %p130 = scmp.eq.s32.totalorder %s31, 3
      %p131 = por %p129, %p130
      %p133 = scmp.ne.s32.totalorder %s118, %s132
      %p134 = scmp.eq.s32.totalorder %s31, 0
      %p135 = por %p133, %p134
      %s137 = sadd.s32 %s136, 1
      %p140 = scmp.eq.s32.totalorder %s25, 3
      %p141 = scmp.ne.s32.totalorder %s136, %s138
      %p142 = scmp.eq.s32.totalorder %s25, 0
      %p143 = por %p141, %p142
      %p144 = scmp.ne.s32.totalorder %s136, %s138
      %p145 = scmp.eq.s32.totalorder %s30, 3
      %p146 = por %p144, %p145
      %p147 = scmp.ne.s32.totalorder %s138, %s139
      %p148 = scmp.eq.s32.totalorder %s30, 0
      %p149 = por %p147, %p148
      %p150 = scmp.ne.s32.totalorder %s138, %s139
      %p151 = scmp.eq.s32.totalorder %s31, 3
      %p152 = por %p150, %p151
      %p154 = scmp.ne.s32.totalorder %s139, %s153
      %p155 = scmp.eq.s32.totalorder %s31, 0
      %p156 = por %p154, %p155
      %s158 = sadd.s32 %s157, 1
      %p161 = scmp.eq.s32.totalorder %s25, 3
      %p162 = scmp.ne.s32.totalorder %s157, %s159
      %p163 = scmp.eq.s32.totalorder %s25, 0
      %p164 = por %p162, %p163
      %p165 = scmp.ne.s32.totalorder %s157, %s159
      %p166 = scmp.eq.s32.totalorder %s30, 3
      %p167 = por %p165, %p166
      %p168 = scmp.ne.s32.totalorder %s159, %s160
      %p169 = scmp.eq.s32.totalorder %s30, 0
      %p170 = por %p168, %p169
      %p171 = scmp.ne.s32.totalorder %s159, %s160
      %p172 = scmp.eq.s32.totalorder %s31, 3
      %p173 = por %p171, %p172
      %p175 = scmp.ne.s32.totalorder %s160, %s174
      %p176 = scmp.eq.s32.totalorder %s31, 0
      %p177 = por %p175, %p176
      %s179 = sadd.s32 %s178, 1
      %p182 = scmp.eq.s32.totalorder %s25, 3
      %p183 = scmp.ne.s32.totalorder %s178, %s180
      %p184 = scmp.eq.s32.totalorder %s25, 0
      %p185 = por %p183, %p184
      %p186 = scmp.ne.s32.totalorder %s178, %s180
      %p187 = scmp.eq.s32.totalorder %s30, 3
      %p188 = por %p186, %p187
      %p189 = scmp.ne.s32.totalorder %s180, %s181
      %p190 = scmp.eq.s32.totalorder %s30, 0
      %p191 = por %p189, %p190
      %p192 = scmp.ne.s32.totalorder %s180, %s181
      %p193 = scmp.eq.s32.totalorder %s31, 3
      %p194 = por %p192, %p193
      %p196 = scmp.ne.s32.totalorder %s181, %s195
      %p197 = scmp.eq.s32.totalorder %s31, 0
      %p198 = por %p196, %p197
      %s200 = sadd.s32 %s199, 1
      %p203 = scmp.eq.s32.totalorder %s25, 3
      %p204 = scmp.ne.s32.totalorder %s199, %s201
      %p205 = scmp.eq.s32.totalorder %s25, 0
      %p206 = por %p204, %p205
      %p207 = scmp.ne.s32.totalorder %s199, %s201
      %p208 = scmp.eq.s32.totalorder %s30, 3
      %p209 = por %p207, %p208
      %p210 = scmp.ne.s32.totalorder %s201, %s202
      %p211 = scmp.eq.s32.totalorder %s30, 0
      %p212 = por %p210, %p211
      %p213 = scmp.ne.s32.totalorder %s201, %s202
      %p214 = scmp.eq.s32.totalorder %s31, 3
      %p215 = por %p213, %p214
      %p217 = scmp.ne.s32.totalorder %s202, %s216
      %p218 = scmp.eq.s32.totalorder %s31, 0
      %p219 = por %p217, %p218
      %s221 = sadd.s32 %s220, 1
      %p224 = scmp.eq.s32.totalorder %s25, 3
      %p225 = scmp.ne.s32.totalorder %s220, %s222
      %p226 = scmp.eq.s32.totalorder %s25, 0
      %p227 = por %p225, %p226
      %p228 = scmp.ne.s32.totalorder %s220, %s222
      %p229 = scmp.eq.s32.totalorder %s30, 3
      %p230 = por %p228, %p229
      %p231 = scmp.ne.s32.totalorder %s222, %s223
      %p232 = scmp.eq.s32.totalorder %s30, 0
      %p233 = por %p231, %p232
      %p234 = scmp.ne.s32.totalorder %s222, %s223
      %p235 = scmp.eq.s32.totalorder %s31, 3
      %p236 = por %p234, %p235
      %p238 = scmp.ne.s32.totalorder %s223, %s237
      %p239 = scmp.eq.s32.totalorder %s31, 0
      %p240 = por %p238, %p239
      %s242 = sadd.s32 %s241, 1
      %p245 = scmp.eq.s32.totalorder %s25, 3
      %p246 = scmp.ne.s32.totalorder %s241, %s243
      %p247 = scmp.eq.s32.totalorder %s25, 0
      %p248 = por %p246, %p247
      %p249 = scmp.ne.s32.totalorder %s241, %s243
      %p250 = scmp.eq.s32.totalorder %s30, 3
      %p251 = por %p249, %p250
      %p252 = scmp.ne.s32.totalorder %s243, %s244
      %p253 = scmp.eq.s32.totalorder %s30, 0
      %p254 = por %p252, %p253
      %p255 = scmp.ne.s32.totalorder %s243, %s244
      %p256 = scmp.eq.s32.totalorder %s31, 3
      %p257 = por %p255, %p256
      %p259 = scmp.ne.s32.totalorder %s244, %s258
      %p260 = scmp.eq.s32.totalorder %s31, 0
      %p261 = por %p259, %p260
      %s263 = sadd.s32 %s262, 1
      %p266 = scmp.eq.s32.totalorder %s25, 3
      %p267 = scmp.ne.s32.totalorder %s262, %s264
      %p268 = scmp.eq.s32.totalorder %s25, 0
      %p269 = por %p267, %p268
      %p270 = scmp.ne.s32.totalorder %s262, %s264
      %p271 = scmp.eq.s32.totalorder %s30, 3
      %p272 = por %p270, %p271
      %p273 = scmp.ne.s32.totalorder %s264, %s265
      %p274 = scmp.eq.s32.totalorder %s30, 0
      %p275 = por %p273, %p274
      %p276 = scmp.ne.s32.totalorder %s264, %s265
      %p277 = scmp.eq.s32.totalorder %s31, 3
      %p278 = por %p276, %p277
      %p280 = scmp.ne.s32.totalorder %s265, %s279
      %p281 = scmp.eq.s32.totalorder %s31, 0
      %p282 = por %p280, %p281
      %s284 = sadd.s32 %s283, 1
      %p287 = scmp.eq.s32.totalorder %s25, 3
      %p288 = scmp.ne.s32.totalorder %s283, %s285
      %p289 = scmp.eq.s32.totalorder %s25, 0
      %p290 = por %p288, %p289
      %p291 = scmp.ne.s32.totalorder %s283, %s285
      %p292 = scmp.eq.s32.totalorder %s30, 3
      %p293 = por %p291, %p292
      %p294 = scmp.ne.s32.totalorder %s285, %s286
      %p295 = scmp.eq.s32.totalorder %s30, 0
      %p296 = por %p294, %p295
      %p297 = scmp.ne.s32.totalorder %s285, %s286
      %p298 = scmp.eq.s32.totalorder %s31, 3
      %p299 = por %p297, %p298
      %p301 = scmp.ne.s32.totalorder %s286, %s300
      %p302 = scmp.eq.s32.totalorder %s31, 0
      %p303 = por %p301, %p302
      %s305 = sadd.s32 %s304, 1
      %p308 = scmp.eq.s32.totalorder %s25, 3
      %p309 = scmp.ne.s32.totalorder %s304, %s306
      %p310 = scmp.eq.s32.totalorder %s25, 0
      %p311 = por %p309, %p310
      %p312 = scmp.ne.s32.totalorder %s304, %s306
      %p313 = scmp.eq.s32.totalorder %s30, 3
      %p314 = por %p312, %p313
      %p315 = scmp.ne.s32.totalorder %s306, %s307
      %p316 = scmp.eq.s32.totalorder %s30, 0
      %p317 = por %p315, %p316
      %p318 = scmp.ne.s32.totalorder %s306, %s307
      %p319 = scmp.eq.s32.totalorder %s31, 3
      %p320 = por %p318, %p319
      %p322 = scmp.ne.s32.totalorder %s307, %s321
      %p323 = scmp.eq.s32.totalorder %s31, 0
      %p324 = por %p322, %p323
      %s325 = ssub.s32 %s32, %s44
      %s326 = ssub.s32 %s33, %s40
      %s327 = sor.u32 %s325, %s326
      %p328 = scmp.eq.s32.totalorder %s327, 0
      %s330 = sadd.s32 %s329, 1
      %s331 = scalar_select %p328, %s329, %s330
      %p334 = pneg %p328
      %p335 = scmp.eq.s32.totalorder %s25, 3
      %p336 = por %p334, %p335
      %p337 = scmp.ne.s32.totalorder %s329, %s332
      %p338 = scmp.eq.s32.totalorder %s25, 0
      %p339 = por %p337, %p338
      %p340 = scmp.ne.s32.totalorder %s329, %s332
      %p341 = scmp.eq.s32.totalorder %s30, 3
      %p342 = por %p340, %p341
      %p343 = scmp.ne.s32.totalorder %s332, %s333
      %p344 = scmp.eq.s32.totalorder %s30, 0
      %p345 = por %p343, %p344
      %p346 = scmp.ne.s32.totalorder %s332, %s333
      %p347 = scmp.eq.s32.totalorder %s31, 3
      %p348 = por %p346, %p347
      %p350 = scmp.ne.s32.totalorder %s333, %s349
      %p351 = scmp.eq.s32.totalorder %s31, 0
      %p352 = por %p350, %p351
      %p353 = scmp.le.s32.totalorder 1, %s25
      %p354 = scmp.lt.s32.totalorder %s25, 5
      %p355 = pnand %p353, %p354
      %p356 = pneg %p355
      // Predicated region
      $region9: #{tpu_custom_call.1} parent=5 // pred_check
        _
      $region10: #{tpu_custom_call.1} parent=5 // pred_check_branch
        %358 = sbr.rel (%p355) target = $region12
      $region11: #{tpu_custom_call.1} parent=5 // pred_region
        %s359 = ssub.s32 %s25, 1
        // Predicated region
        $region13: #{tpu_custom_call.1} parent=11 // pred_check
          %p360 = pneg %p86
        $region14: #{tpu_custom_call.1} parent=11 // pred_check_branch
          %362 = sbr.rel (%p360) target = $region16
        $region15: #{tpu_custom_call.1} parent=11 // pred_region
          _
        $region16: #{tpu_custom_call.1} parent=11 // pred_fallthru
          _
        // Predicated region
        $region17: #{tpu_custom_call.1} parent=11 // pred_check
          %p363 = pneg %p107
        $region18: #{tpu_custom_call.1} parent=11 // pred_check_branch
          %365 = sbr.rel (%p363) target = $region20
        $region19: #{tpu_custom_call.1} parent=11 // pred_region
          _
        $region20: #{tpu_custom_call.1} parent=11 // pred_fallthru
          _
        // Predicated region
        $region21: #{tpu_custom_call.1} parent=11 // pred_check
          %p366 = pneg %p128
        $region22: #{tpu_custom_call.1} parent=11 // pred_check_branch
          %368 = sbr.rel (%p366) target = $region24
        $region23: #{tpu_custom_call.1} parent=11 // pred_region
          _
        $region24: #{tpu_custom_call.1} parent=11 // pred_fallthru
          _
        // Predicated region
        $region25: #{tpu_custom_call.1} parent=11 // pred_check
          %p369 = pneg %p149
        $region26: #{tpu_custom_call.1} parent=11 // pred_check_branch
          %371 = sbr.rel (%p369) target = $region28
        $region27: #{tpu_custom_call.1} parent=11 // pred_region
          _
        $region28: #{tpu_custom_call.1} parent=11 // pred_fallthru
          _
        // Predicated region
        $region29: #{tpu_custom_call.1} parent=11 // pred_check
          %p372 = pneg %p170
        $region30: #{tpu_custom_call.1} parent=11 // pred_check_branch
          %374 = sbr.rel (%p372) target = $region32
        $region31: #{tpu_custom_call.1} parent=11 // pred_region
          _
        $region32: #{tpu_custom_call.1} parent=11 // pred_fallthru
          _
        // Predicated region
        $region33: #{tpu_custom_call.1} parent=11 // pred_check
          %p375 = pneg %p191
        $region34: #{tpu_custom_call.1} parent=11 // pred_check_branch
          %377 = sbr.rel (%p375) target = $region36
        $region35: #{tpu_custom_call.1} parent=11 // pred_region
          _
        $region36: #{tpu_custom_call.1} parent=11 // pred_fallthru
          _
        // Predicated region
        $region37: #{tpu_custom_call.1} parent=11 // pred_check
          %p378 = pneg %p212
        $region38: #{tpu_custom_call.1} parent=11 // pred_check_branch
          %380 = sbr.rel (%p378) target = $region40
        $region39: #{tpu_custom_call.1} parent=11 // pred_region
          _
        $region40: #{tpu_custom_call.1} parent=11 // pred_fallthru
          _
        // Predicated region
        $region41: #{tpu_custom_call.1} parent=11 // pred_check
          %p381 = pneg %p233
        $region42: #{tpu_custom_call.1} parent=11 // pred_check_branch
          %383 = sbr.rel (%p381) target = $region44
        $region43: #{tpu_custom_call.1} parent=11 // pred_region
          _
        $region44: #{tpu_custom_call.1} parent=11 // pred_fallthru
          _
        // Predicated region
        $region45: #{tpu_custom_call.1} parent=11 // pred_check
          %p384 = pneg %p254
        $region46: #{tpu_custom_call.1} parent=11 // pred_check_branch
          %386 = sbr.rel (%p384) target = $region48
        $region47: #{tpu_custom_call.1} parent=11 // pred_region
          _
        $region48: #{tpu_custom_call.1} parent=11 // pred_fallthru
          _
        // Predicated region
        $region49: #{tpu_custom_call.1} parent=11 // pred_check
          %p387 = pneg %p275
        $region50: #{tpu_custom_call.1} parent=11 // pred_check_branch
          %389 = sbr.rel (%p387) target = $region52
        $region51: #{tpu_custom_call.1} parent=11 // pred_region
          _
        $region52: #{tpu_custom_call.1} parent=11 // pred_fallthru
          _
        // Predicated region
        $region53: #{tpu_custom_call.1} parent=11 // pred_check
          %p390 = pneg %p296
        $region54: #{tpu_custom_call.1} parent=11 // pred_check_branch
          %392 = sbr.rel (%p390) target = $region56
        $region55: #{tpu_custom_call.1} parent=11 // pred_region
          _
        $region56: #{tpu_custom_call.1} parent=11 // pred_fallthru
          _
        // Predicated region
        $region57: #{tpu_custom_call.1} parent=11 // pred_check
          %p393 = pneg %p317
        $region58: #{tpu_custom_call.1} parent=11 // pred_check_branch
          %395 = sbr.rel (%p393) target = $region60
        $region59: #{tpu_custom_call.1} parent=11 // pred_region
          _
        $region60: #{tpu_custom_call.1} parent=11 // pred_fallthru
          _
      $region12: #{tpu_custom_call.1} parent=5 // pred_fallthru
        _
      %p396 = scmp.lt.s32.totalorder %s25, 4
      // Predicated region
      $region61: #{tpu_custom_call.1} parent=5 // pred_check
        %p397 = pneg %p396
      $region62: #{tpu_custom_call.1} parent=5 // pred_check_branch
        %399 = sbr.rel (%p397) target = $region64
      $region63: #{tpu_custom_call.1} parent=5 // pred_region
        // Predicated region
        $region65: #{tpu_custom_call.1} parent=63 // pred_check
          %p400 = pneg %p59
        $region66: #{tpu_custom_call.1} parent=63 // pred_check_branch
          %402 = sbr.rel (%p400) target = $region68
        $region67: #{tpu_custom_call.1} parent=63 // pred_region
          %s403 = sand.u32 %s49, 1
          %s404 = scalar_lea.sflag [#allocation10], %s403
          %s405 = sand.u32 %s49, 1
          %s406 = smul.addr %s405, 16
          %s407 = scalar_lea.vmem [#allocation9], %s406
          %s408 = smul.u32 2, %s33
          %s410 = ssub.s32 256, 256
          %411 = vsyncadd %s404, %s410
          %s412 = smul.addr %s32, 4
          %s413 = sadd.s32 %s408, %s412
          %s414 = smul.addr %s413, 128
          %s415 = scalar_lea.hbm %s0, %s414
          %s416 = sshll.u32 %s407, 4
          %s417 = int_to_ptr.vmem [resolvable:$true] %s416
          %422 = dma.hbm_to_vmem [thread:$0]  %s415, 256, %s417, %s404, 128, 128, 8
        $region68: #{tpu_custom_call.1} parent=63 // pred_fallthru
          _
      $region64: #{tpu_custom_call.1} parent=5 // pred_fallthru
        _
      %p423 = scmp.le.s32.totalorder 1, %s25
      %p424 = scmp.lt.s32.totalorder %s25, 5
      %p425 = pnand %p423, %p424
      %p426 = pneg %p425
      // Predicated region
      $region69: #{tpu_custom_call.1} parent=5 // pred_check
        _
      $region70: #{tpu_custom_call.1} parent=5 // pred_check_branch
        %428 = sbr.rel (%p425) target = $region72
      $region71: #{tpu_custom_call.1} parent=5 // pred_region
        %s429 = ssub.s32 %s25, 1
        %s430 = sand.u32 %s52, 1
        %s431 = scalar_lea.sflag [#allocation10], %s430
        %s432 = sand.u32 %s52, 1
        %s433 = smul.addr %s432, 16
        %s434 = scalar_lea.vmem [#allocation9], %s433
        // Predicated region
        $region73: #{tpu_custom_call.1} parent=71 // pred_check
          %p435 = pneg %p65
        $region74: #{tpu_custom_call.1} parent=71 // pred_check_branch
          %437 = sbr.rel (%p435) target = $region76
        $region75: #{tpu_custom_call.1} parent=71 // pred_region
          %438 = dma.done %s431, 256
        $region76: #{tpu_custom_call.1} parent=71 // pred_fallthru
          _
        %s439 = sand.u32 %s52, 1
        %s440 = scalar_lea.sflag [#allocation10], %s439
        %s441 = sand.u32 %s52, 1
        %s442 = smul.addr %s441, 16
        %s443 = scalar_lea.vmem [#allocation9], %s442
        %p444 = pneg %p65
        %p445 = pneg %p62
        %p446 = pneg %p86
        %p447 = pneg %p83
        %p448 = pneg %p107
        %p449 = pneg %p104
        %p450 = pneg %p128
        %p451 = pneg %p125
        %p452 = pneg %p149
        %p453 = pneg %p146
        %p454 = pneg %p170
        %p455 = pneg %p167
        %p456 = pneg %p191
        %p457 = pneg %p188
        %p458 = pneg %p212
        %p459 = pneg %p209
        %p460 = pneg %p233
        %p461 = pneg %p230
        %p462 = pneg %p254
        %p463 = pneg %p251
        %p464 = pneg %p275
        %p465 = pneg %p272
        %p466 = pneg %p296
        %p467 = pneg %p293
        %p468 = pneg %p317
        %p469 = pneg %p314
        %p470 = pneg %p345
        %p471 = pneg %p342
        %s472 = sand.u32 %s332, 1
        %s473 = scalar_lea.sflag [#allocation11], %s472
        %s474 = sand.u32 %s332, 1
        %s475 = smul.addr %s474, 16
        %s476 = scalar_lea.vmem [#allocation12], %s475
        %s477 = smul.u32 2, %s35
        %s478 = smul.u32 2, %s35
        %s480 = smul.u32 %s35, 16
        %v481 = vld [vmem:[%s434] sm:$0xff]
        %v482 = vld [vmem:[%s434 + $0x8] sm:$0xff]
        %v483 = vld [vmem:[%s1] sm:$0x1]
        %v484 = vld [vmem:[%s2] sm:$0x1]
        %vm485 = vcmask 261120
        %v486 = vsel %vm485, %v481, 0.0
        %487 = vadd.xlane.f32.xlu0 %v486
        %v488 = vpop.xlane.xlu0 %487
        %v489 = vsel %vm485, %v482, 0.0
        %490 = vadd.xlane.f32.xlu0 %v489
        %v491 = vpop.xlane.xlu0 %490
        %v492 = vrcp.pop 32.0
        %v493 = vmul.f32 %v488, %v492
        %v494 = vmul.f32 %v491, %v492
        %v495 = vsub.f32 %v481, %v493
        %v496 = vsub.f32 %v482, %v494
        %v497 = vmul.f32 %v495, %v495
        %v498 = vmul.f32 %v496, %v496
        %v499 = vsel %vm485, %v497, 0.0
        %500 = vadd.xlane.f32.xlu0 %v499
        %v501 = vpop.xlane.xlu0 %500
        %v502 = vsel %vm485, %v498, 0.0
        %503 = vadd.xlane.f32.xlu0 %v502
        %v504 = vpop.xlane.xlu0 %503
        %v505 = vmul.f32 %v501, %v492
        %v506 = vmul.f32 %v504, %v492
        %v507 = vadd.f32 %v505, 1e-05
        %v508 = vadd.f32 %v506, 1e-05
        %v509 = vrsqrt.pop %v507
        %v510 = vrsqrt.pop %v508
        %v511 = vmul.f32 %v495, %v509
        %v512 = vmul.f32 %v496, %v510
        %v514 = vlaneseq
        %v515 = vshrl.u32 %v514, 7
        %v516 = vsub.s32 0, %v515
        %v517 = vrot.slane %v483, %v516
        %v519 = vmul.f32 %v511, %v517
        %v520 = vmul.f32 %v512, %v517
        %v522 = vlaneseq
        %v523 = vshrl.u32 %v522, 7
        %v524 = vsub.s32 0, %v523
        %v525 = vrot.slane %v484, %v524
        %v527 = vadd.f32 %v519, %v525
        %v528 = vadd.f32 %v520, %v525
        %v529 = vpack.c.bf16 %v528, %v527
        %v530 = vld [vmem:[%s3] sm:$0xf]
        %v531 = vld [vmem:[%s3 + $0x4] sm:$0xf]
        %v532 = vld [vmem:[%s3 + $0x8] sm:$0xf]
        %v533 = vld [vmem:[%s3 + $0xc] sm:$0xf]
        %v534 = vld [vmem:[%s4] sm:$0x1]
        %v536 = vlaneseq
        %v537 = vshrl.u32 %v536, 7
        %v538 = vsub.s32 0, %v537
        %v539 = vrot.slane %v534, %v538
        %v545 = vunpack.c.l.b16 %v530
        %v546 = vunpack.c.l.b16 %v531
        %v547 = vunpack.c.l.b16 %v532
        %v548 = vunpack.c.l.b16 %v533
        %v549 = vpack.c.b16 %v546, %v545
        %v550 = vpack.c.b16 %v548, %v547
        %v554 = vsel %vm485, %v529, 0
        %556 = vmatprep.subr.bf16.mxu0 0
        %557 = vmatpush1.bf16.msra.mxu0 %v549
        %558 = vmatprep.subr.bf16.mxu0 0
        %559 = vmatpush1.bf16.msra.mxu0 %v550
        %560 = vmatprep.subr.bf16.mxu0 0
        %561 = vmatpush1.bf16.msra.mxu0 0
        %562 = vmatprep.subr.bf16.mxu0 0
        %563 = vmatpush1.bf16.msra.mxu0 0
        %564 = vmatprep.subr.bf16.mxu0 0
        %565 = vmatpush1.bf16.msra.mxu0 0
        %566 = vmatprep.subr.bf16.mxu0 0
        %567 = vmatpush1.bf16.msra.mxu0 0
        %568 = vmatprep.subr.bf16.mxu0 0
        %569 = vmatpush1.bf16.msra.mxu0 0
        %570 = vmatprep.subr.bf16.mxu0 0
        %571 = vmatpush1.bf16.msra.mxu0 0
        %572 = vmatprep.subr.bf16.mxu0 0
        %573 = vmatpush1.bf16.msra.mxu0 0
        %574 = vmatprep.subr.bf16.mxu0 0
        %575 = vmatpush1.bf16.msra.mxu0 0
        %576 = vmatprep.subr.bf16.mxu0 0
        %577 = vmatpush1.bf16.msra.mxu0 0
        %578 = vmatprep.subr.bf16.mxu0 0
        %579 = vmatpush1.bf16.msra.mxu0 0
        %580 = vmatprep.subr.bf16.mxu0 0
        %581 = vmatpush1.bf16.msra.mxu0 0
        %582 = vmatprep.subr.bf16.mxu0 0
        %583 = vmatpush1.bf16.msra.mxu0 0
        %584 = vmatprep.subr.bf16.mxu0 0
        %585 = vmatpush1.bf16.msra.mxu0 0
        %586 = vmatprep.subr.bf16.mxu0 0
        %587 = vmatpush1.bf16.msra.mxu0 0
        %588 = vmatprep.mubr.bf16.mxu0 0
        %589 = vmatmul.mubr.bf16.gmra.mrb[0].mxu0 %v554
        %v590 = vpop.f32.mrb[0].mxu0
        %v591 = vadd.f32 %v539, %v590
        %v592 = vpop.f32.mrb[0].mxu0
        %v593 = vpop.f32.mrb[0].mxu0
        %v594 = vadd.f32 %v539, %v593
        %v595 = vpop.f32.mrb[0].mxu0
        %596 = vdwg.mxu0
        %v597 = vpack.c.bf16 %v594, %v591
        %vm598 = vcmask 64512
        %599 = vst.msk [vmem:[#allocation4] sm:$0xff] %vm598, %v597
        %601 = vrot.lane.b32.xlu0 %v597, 96
        %v602 = vpop.permute.xlu0 %601
        %s604 = sshra.s32 %s480, 4
        %s605 = sand.u32 %s480, 15
        %s606 = smul.addr %s604, 8
        %s607 = scalar_lea.vmem [#allocation2], %s606
        %608 = vst.msk [vmem:[%s607] sm:$0xff] %vm598, %v602
        %609 = vrot.lane.b32.xlu0 %v597, 64
        %v610 = vpop.permute.xlu0 %609
        %s612 = smul.addr %s604, 8
        %s613 = scalar_lea.vmem [#allocation3], %s612
        %614 = vst.msk [vmem:[%s613] sm:$0xff] %vm598, %v610
        %615 = vrot.lane.b32.xlu0 %v597, 120
        %v616 = vpop.permute.xlu0 %615
        %s618 = scalar_lea.vmem [#allocation4], 8
        %619 = vst.msk [vmem:[%s618] sm:$0xff] %vm598, %v616
        %620 = vrot.lane.b32.xlu0 %v597, 88
        %v621 = vpop.permute.xlu0 %620
        %s623 = sadd.s32 %s604, 2
        %s624 = smul.addr %s623, 8
        %s625 = scalar_lea.vmem [#allocation2], %s624
        %626 = vst.msk [vmem:[%s625] sm:$0xff] %vm598, %v621
        %627 = vrot.lane.b32.xlu0 %v597, 56
        %v628 = vpop.permute.xlu0 %627
        %s630 = smul.addr %s623, 8
        %s631 = scalar_lea.vmem [#allocation3], %s630
        %632 = vst.msk [vmem:[%s631] sm:$0xff] %vm598, %v628
        %633 = vrot.lane.b32.xlu0 %v597, 112
        %v634 = vpop.permute.xlu0 %633
        %s636 = scalar_lea.vmem [#allocation4], 16
        %637 = vst.msk [vmem:[%s636] sm:$0xff] %vm598, %v634
        %638 = vrot.lane.b32.xlu0 %v597, 80
        %v639 = vpop.permute.xlu0 %638
        %s641 = sadd.s32 %s604, 4
        %s642 = smul.addr %s641, 8
        %s643 = scalar_lea.vmem [#allocation2], %s642
        %644 = vst.msk [vmem:[%s643] sm:$0xff] %vm598, %v639
        %645 = vrot.lane.b32.xlu0 %v597, 48
        %v646 = vpop.permute.xlu0 %645
        %s648 = smul.addr %s641, 8
        %s649 = scalar_lea.vmem [#allocation3], %s648
        %650 = vst.msk [vmem:[%s649] sm:$0xff] %vm598, %v646
        %651 = vrot.lane.b32.xlu0 %v597, 104
        %v652 = vpop.permute.xlu0 %651
        %s654 = scalar_lea.vmem [#allocation4], 24
        %655 = vst.msk [vmem:[%s654] sm:$0xff] %vm598, %v652
        %656 = vrot.lane.b32.xlu0 %v597, 72
        %v657 = vpop.permute.xlu0 %656
        %s659 = sadd.s32 %s604, 6
        %s660 = smul.addr %s659, 8
        %s661 = scalar_lea.vmem [#allocation2], %s660
        %662 = vst.msk [vmem:[%s661] sm:$0xff] %vm598, %v657
        %663 = vrot.lane.b32.xlu0 %v597, 40
        %v664 = vpop.permute.xlu0 %663
        %s666 = smul.addr %s659, 8
        %s667 = scalar_lea.vmem [#allocation3], %s666
        %668 = vst.msk [vmem:[%s667] sm:$0xff] %vm598, %v664
        %v669 = vld [vmem:[#allocation4] sm:$0xff]
        %v670 = vld [vmem:[#allocation4 + $0x8] sm:$0xff]
        %v671 = vld [vmem:[#allocation4 + $0x10] sm:$0xff]
        %v672 = vld [vmem:[#allocation4 + $0x18] sm:$0xff]
        %v673 = vld [vmem:[%s607] sm:$0xff]
        %v674 = vld [vmem:[%s607 + $0x10] sm:$0xff]
        %v675 = vld [vmem:[%s607 + $0x20] sm:$0xff]
        %v676 = vld [vmem:[%s607 + $0x30] sm:$0xff]
        %v677 = vld [vmem:[%s613] sm:$0xff]
        %v678 = vld [vmem:[%s613 + $0x10] sm:$0xff]
        %v679 = vld [vmem:[%s613 + $0x20] sm:$0xff]
        %v680 = vld [vmem:[%s613 + $0x30] sm:$0xff]
        %v681 = vlaneseq
        %v682 = vshrl.u32 %v681, 7
        %v683 = vadd.s32 %v682, 8
        %v684 = vlaneseq
        %v685 = vand.u32 %v684, 127
        %vm686 = vcmp.ge.s32.totalorder %v682, %v685
        %vm687 = vcmp.ge.s32.totalorder %v683, %v685
        %v689 = vsel %vm598, %v669, 0
        %v692 = vsel %vm598, %v673, 0
        %694 = vmatprep.subr.bf16.mxu0 0
        %695 = vmatpush1.bf16.xpose.msra.mxu0 %v692
        %696 = vmatprep.subr.bf16.mxu0 0
        %697 = vmatpush1.bf16.xpose.msra.mxu0 0
        %698 = vmatprep.subr.bf16.mxu0 0
        %699 = vmatpush1.bf16.xpose.msra.mxu0 0
        %700 = vmatprep.subr.bf16.mxu0 0
        %701 = vmatpush1.bf16.xpose.msra.mxu0 0
        %702 = vmatprep.subr.bf16.mxu0 0
        %703 = vmatpush1.bf16.xpose.msra.mxu0 0
        %704 = vmatprep.subr.bf16.mxu0 0
        %705 = vmatpush1.bf16.xpose.msra.mxu0 0
        %706 = vmatprep.subr.bf16.mxu0 0
        %707 = vmatpush1.bf16.xpose.msra.mxu0 0
        %708 = vmatprep.subr.bf16.mxu0 0
        %709 = vmatpush1.bf16.xpose.msra.mxu0 0
        %710 = vmatprep.subr.bf16.mxu0 0
        %711 = vmatpush1.bf16.xpose.msra.mxu0 0
        %712 = vmatprep.subr.bf16.mxu0 0
        %713 = vmatpush1.bf16.xpose.msra.mxu0 0
        %714 = vmatprep.subr.bf16.mxu0 0
        %715 = vmatpush1.bf16.xpose.msra.mxu0 0
        %716 = vmatprep.subr.bf16.mxu0 0
        %717 = vmatpush1.bf16.xpose.msra.mxu0 0
        %718 = vmatprep.subr.bf16.mxu0 0
        %719 = vmatpush1.bf16.xpose.msra.mxu0 0
        %720 = vmatprep.subr.bf16.mxu0 0
        %721 = vmatpush1.bf16.xpose.msra.mxu0 0
        %722 = vmatprep.subr.bf16.mxu0 0
        %723 = vmatpush1.bf16.xpose.msra.mxu0 0
        %724 = vmatprep.subr.bf16.mxu0 0
        %725 = vmatpush1.bf16.xpose.msra.mxu0 0
        %726 = vmatprep.mubr.bf16.mxu0 0
        %727 = vmatmul.mubr.bf16.gmra.mrb[0].mxu0 %v689
        %v728 = vpop.f32.mrb[0].mxu0
        %v729 = vadd.f32 0.0, %v728
        %v730 = vpop.f32.mrb[0].mxu0
        %v731 = vpop.f32.mrb[0].mxu0
        %v732 = vadd.f32 0.0, %v731
        %v733 = vpop.f32.mrb[0].mxu0
        %734 = vdwg.mxu0
        %v736 = vsel %vm598, %v670, 0
        %v739 = vsel %vm598, %v674, 0
        %741 = vmatprep.subr.bf16.mxu0 0
        %742 = vmatpush1.bf16.xpose.msra.mxu0 %v739
        %743 = vmatprep.subr.bf16.mxu0 0
        %744 = vmatpush1.bf16.xpose.msra.mxu0 0
        %745 = vmatprep.subr.bf16.mxu0 0
        %746 = vmatpush1.bf16.xpose.msra.mxu0 0
        %747 = vmatprep.subr.bf16.mxu0 0
        %748 = vmatpush1.bf16.xpose.msra.mxu0 0
        %749 = vmatprep.subr.bf16.mxu0 0
        %750 = vmatpush1.bf16.xpose.msra.mxu0 0
        %751 = vmatprep.subr.bf16.mxu0 0
        %752 = vmatpush1.bf16.xpose.msra.mxu0 0
        %753 = vmatprep.subr.bf16.mxu0 0
        %754 = vmatpush1.bf16.xpose.msra.mxu0 0
        %755 = vmatprep.subr.bf16.mxu0 0
        %756 = vmatpush1.bf16.xpose.msra.mxu0 0
        %757 = vmatprep.subr.bf16.mxu0 0
        %758 = vmatpush1.bf16.xpose.msra.mxu0 0
        %759 = vmatprep.subr.bf16.mxu0 0
        %760 = vmatpush1.bf16.xpose.msra.mxu0 0
        %761 = vmatprep.subr.bf16.mxu0 0
        %762 = vmatpush1.bf16.xpose.msra.mxu0 0
        %763 = vmatprep.subr.bf16.mxu0 0
        %764 = vmatpush1.bf16.xpose.msra.mxu0 0
        %765 = vmatprep.subr.bf16.mxu0 0
        %766 = vmatpush1.bf16.xpose.msra.mxu0 0
        %767 = vmatprep.subr.bf16.mxu0 0
        %768 = vmatpush1.bf16.xpose.msra.mxu0 0
        %769 = vmatprep.subr.bf16.mxu0 0
        %770 = vmatpush1.bf16.xpose.msra.mxu0 0
        %771 = vmatprep.subr.bf16.mxu0 0
        %772 = vmatpush1.bf16.xpose.msra.mxu0 0
        %773 = vmatprep.mubr.bf16.mxu0 0
        %774 = vmatmul.mubr.bf16.gmra.mrb[0].mxu0 %v736
        %v775 = vpop.f32.mrb[0].mxu0
        %v776 = vadd.f32 0.0, %v775
        %v777 = vpop.f32.mrb[0].mxu0
        %v778 = vpop.f32.mrb[0].mxu0
        %v779 = vadd.f32 0.0, %v778
        %v780 = vpop.f32.mrb[0].mxu0
        %781 = vdwg.mxu0
        %v783 = vsel %vm598, %v671, 0
        %v786 = vsel %vm598, %v675, 0
        %788 = vmatprep.subr.bf16.mxu0 0
        %789 = vmatpush1.bf16.xpose.msra.mxu0 %v786
        %790 = vmatprep.subr.bf16.mxu0 0
        %791 = vmatpush1.bf16.xpose.msra.mxu0 0
        %792 = vmatprep.subr.bf16.mxu0 0
        %793 = vmatpush1.bf16.xpose.msra.mxu0 0
        %794 = vmatprep.subr.bf16.mxu0 0
        %795 = vmatpush1.bf16.xpose.msra.mxu0 0
        %796 = vmatprep.subr.bf16.mxu0 0
        %797 = vmatpush1.bf16.xpose.msra.mxu0 0
        %798 = vmatprep.subr.bf16.mxu0 0
        %799 = vmatpush1.bf16.xpose.msra.mxu0 0
        %800 = vmatprep.subr.bf16.mxu0 0
        %801 = vmatpush1.bf16.xpose.msra.mxu0 0
        %802 = vmatprep.subr.bf16.mxu0 0
        %803 = vmatpush1.bf16.xpose.msra.mxu0 0
        %804 = vmatprep.subr.bf16.mxu0 0
        %805 = vmatpush1.bf16.xpose.msra.mxu0 0
        %806 = vmatprep.subr.bf16.mxu0 0
        %807 = vmatpush1.bf16.xpose.msra.mxu0 0
        %808 = vmatprep.subr.bf16.mxu0 0
        %809 = vmatpush1.bf16.xpose.msra.mxu0 0
        %810 = vmatprep.subr.bf16.mxu0 0
        %811 = vmatpush1.bf16.xpose.msra.mxu0 0
        %812 = vmatprep.subr.bf16.mxu0 0
        %813 = vmatpush1.bf16.xpose.msra.mxu0 0
        %814 = vmatprep.subr.bf16.mxu0 0
        %815 = vmatpush1.bf16.xpose.msra.mxu0 0
        %816 = vmatprep.subr.bf16.mxu0 0
        %817 = vmatpush1.bf16.xpose.msra.mxu0 0
        %818 = vmatprep.subr.bf16.mxu0 0
        %819 = vmatpush1.bf16.xpose.msra.mxu0 0
        %820 = vmatprep.mubr.bf16.mxu0 0
        %821 = vmatmul.mubr.bf16.gmra.mrb[0].mxu0 %v783
        %v822 = vpop.f32.mrb[0].mxu0
        %v823 = vadd.f32 0.0, %v822
        %v824 = vpop.f32.mrb[0].mxu0
        %v825 = vpop.f32.mrb[0].mxu0
        %v826 = vadd.f32 0.0, %v825
        %v827 = vpop.f32.mrb[0].mxu0
        %828 = vdwg.mxu0
        %v830 = vsel %vm598, %v672, 0
        %v833 = vsel %vm598, %v676, 0
        %835 = vmatprep.subr.bf16.mxu0 0
        %836 = vmatpush1.bf16.xpose.msra.mxu0 %v833
        %837 = vmatprep.subr.bf16.mxu0 0
        %838 = vmatpush1.bf16.xpose.msra.mxu0 0
        %839 = vmatprep.subr.bf16.mxu0 0
        %840 = vmatpush1.bf16.xpose.msra.mxu0 0
        %841 = vmatprep.subr.bf16.mxu0 0
        %842 = vmatpush1.bf16.xpose.msra.mxu0 0
        %843 = vmatprep.subr.bf16.mxu0 0
        %844 = vmatpush1.bf16.xpose.msra.mxu0 0
        %845 = vmatprep.subr.bf16.mxu0 0
        %846 = vmatpush1.bf16.xpose.msra.mxu0 0
        %847 = vmatprep.subr.bf16.mxu0 0
        %848 = vmatpush1.bf16.xpose.msra.mxu0 0
        %849 = vmatprep.subr.bf16.mxu0 0
        %850 = vmatpush1.bf16.xpose.msra.mxu0 0
        %851 = vmatprep.subr.bf16.mxu0 0
        %852 = vmatpush1.bf16.xpose.msra.mxu0 0
        %853 = vmatprep.subr.bf16.mxu0 0
        %854 = vmatpush1.bf16.xpose.msra.mxu0 0
        %855 = vmatprep.subr.bf16.mxu0 0
        %856 = vmatpush1.bf16.xpose.msra.mxu0 0
        %857 = vmatprep.subr.bf16.mxu0 0
        %858 = vmatpush1.bf16.xpose.msra.mxu0 0
        %859 = vmatprep.subr.bf16.mxu0 0
        %860 = vmatpush1.bf16.xpose.msra.mxu0 0
        %861 = vmatprep.subr.bf16.mxu0 0
        %862 = vmatpush1.bf16.xpose.msra.mxu0 0
        %863 = vmatprep.subr.bf16.mxu0 0
        %864 = vmatpush1.bf16.xpose.msra.mxu0 0
        %865 = vmatprep.subr.bf16.mxu0 0
        %866 = vmatpush1.bf16.xpose.msra.mxu0 0
        %867 = vmatprep.mubr.bf16.mxu0 0
        %868 = vmatmul.mubr.bf16.gmra.mrb[0].mxu0 %v830
        %v869 = vpop.f32.mrb[0].mxu0
        %v870 = vadd.f32 0.0, %v869
        %v871 = vpop.f32.mrb[0].mxu0
        %v872 = vpop.f32.mrb[0].mxu0
        %v873 = vadd.f32 0.0, %v872
        %v874 = vpop.f32.mrb[0].mxu0
        %875 = vdwg.mxu0
        %v876 = vsel %vm686, 1, 0
        %v877 = vsel %vm687, 1, 0
        %vm878 = vcmp.eq.s32.totalorder %v876, 1
        %vm879 = vcmp.eq.s32.totalorder %v877, 1
        %v880 = vsel %vm878, %v729, -inf
        %v881 = vsel %vm879, %v732, -inf
        %v882 = vsel %vm878, %v776, -inf
        %v883 = vsel %vm879, %v779, -inf
        %v884 = vsel %vm878, %v823, -inf
        %v885 = vsel %vm879, %v826, -inf
        %v886 = vsel %vm878, %v870, -inf
        %v887 = vsel %vm879, %v873, -inf
        %vm888 = vcmask 130048
        %v889 = vsel %vm888, %v880, -inf
        %890 = vmax.xlane.f32.xlu0 %v889
        %v891 = vpop.xlane.xlu0 %890
        %v892 = vsel %vm888, %v881, -inf
        %893 = vmax.xlane.f32.xlu0 %v892
        %v894 = vpop.xlane.xlu0 %893
        %v895 = vsel %vm888, %v882, -inf
        %896 = vmax.xlane.f32.xlu0 %v895
        %v897 = vpop.xlane.xlu0 %896
        %v898 = vsel %vm888, %v883, -inf
        %899 = vmax.xlane.f32.xlu0 %v898
        %v900 = vpop.xlane.xlu0 %899
        %v901 = vsel %vm888, %v884, -inf
        %902 = vmax.xlane.f32.xlu0 %v901
        %v903 = vpop.xlane.xlu0 %902
        %v904 = vsel %vm888, %v885, -inf
        %905 = vmax.xlane.f32.xlu0 %v904
        %v906 = vpop.xlane.xlu0 %905
        %v907 = vsel %vm888, %v886, -inf
        %908 = vmax.xlane.f32.xlu0 %v907
        %v909 = vpop.xlane.xlu0 %908
        %v910 = vsel %vm888, %v887, -inf
        %911 = vmax.xlane.f32.xlu0 %v910
        %v912 = vpop.xlane.xlu0 %911
        %v913 = vsub.f32 %v880, %v891
        %v914 = vsub.f32 %v881, %v894
        %v915 = vsub.f32 %v882, %v897
        %v916 = vsub.f32 %v883, %v900
        %v917 = vsub.f32 %v884, %v903
        %v918 = vsub.f32 %v885, %v906
        %v919 = vsub.f32 %v886, %v909
        %v920 = vsub.f32 %v887, %v912
        %v921 = vmul.f32 %v913, 1.442695
        %v922 = vpow.pop %v921
        %v923 = vmul.f32 %v914, 1.442695
        %v924 = vpow.pop %v923
        %v925 = vmul.f32 %v915, 1.442695
        %v926 = vpow.pop %v925
        %v927 = vmul.f32 %v916, 1.442695
        %v928 = vpow.pop %v927
        %v929 = vmul.f32 %v917, 1.442695
        %v930 = vpow.pop %v929
        %v931 = vmul.f32 %v918, 1.442695
        %v932 = vpow.pop %v931
        %v933 = vmul.f32 %v919, 1.442695
        %v934 = vpow.pop %v933
        %v935 = vmul.f32 %v920, 1.442695
        %v936 = vpow.pop %v935
        %vm937 = vcmask 7168
        %938 = vst.msk [vmem:[#allocation5] sm:$0xff] %vm937, %v891
        %939 = vst.msk [vmem:[#allocation5 + $0x8] sm:$0xff] %vm937, %v894
        %940 = vst.msk [vmem:[#allocation5 + $0x10] sm:$0xff] %vm937, %v897
        %941 = vst.msk [vmem:[#allocation5 + $0x18] sm:$0xff] %vm937, %v900
        %942 = vst.msk [vmem:[#allocation5 + $0x20] sm:$0xff] %vm937, %v903
        %943 = vst.msk [vmem:[#allocation5 + $0x28] sm:$0xff] %vm937, %v906
        %944 = vst.msk [vmem:[#allocation5 + $0x30] sm:$0xff] %vm937, %v909
        %945 = vst.msk [vmem:[#allocation5 + $0x38] sm:$0xff] %vm937, %v912
        %v946 = vsel %vm888, %v922, 0.0
        %947 = vadd.xlane.f32.xlu0 %v946
        %v948 = vpop.xlane.xlu0 %947
        %v949 = vsel %vm888, %v924, 0.0
        %950 = vadd.xlane.f32.xlu0 %v949
        %v951 = vpop.xlane.xlu0 %950
        %v952 = vsel %vm888, %v926, 0.0
        %953 = vadd.xlane.f32.xlu0 %v952
        %v954 = vpop.xlane.xlu0 %953
        %v955 = vsel %vm888, %v928, 0.0
        %956 = vadd.xlane.f32.xlu0 %v955
        %v957 = vpop.xlane.xlu0 %956
        %v958 = vsel %vm888, %v930, 0.0
        %959 = vadd.xlane.f32.xlu0 %v958
        %v960 = vpop.xlane.xlu0 %959
        %v961 = vsel %vm888, %v932, 0.0
        %962 = vadd.xlane.f32.xlu0 %v961
        %v963 = vpop.xlane.xlu0 %962
        %v964 = vsel %vm888, %v934, 0.0
        %965 = vadd.xlane.f32.xlu0 %v964
        %v966 = vpop.xlane.xlu0 %965
        %v967 = vsel %vm888, %v936, 0.0
        %968 = vadd.xlane.f32.xlu0 %v967
        %v969 = vpop.xlane.xlu0 %968
        %970 = vst.msk [vmem:[#allocation6] sm:$0xff] %vm937, %v948
        %971 = vst.msk [vmem:[#allocation6 + $0x8] sm:$0xff] %vm937, %v951
        %972 = vst.msk [vmem:[#allocation6 + $0x10] sm:$0xff] %vm937, %v954
        %973 = vst.msk [vmem:[#allocation6 + $0x18] sm:$0xff] %vm937, %v957
        %974 = vst.msk [vmem:[#allocation6 + $0x20] sm:$0xff] %vm937, %v960
        %975 = vst.msk [vmem:[#allocation6 + $0x28] sm:$0xff] %vm937, %v963
        %976 = vst.msk [vmem:[#allocation6 + $0x30] sm:$0xff] %vm937, %v966
        %977 = vst.msk [vmem:[#allocation6 + $0x38] sm:$0xff] %vm937, %v969
        %v978 = vpack.c.bf16 %v924, %v922
        %v979 = vpack.c.bf16 %v928, %v926
        %v980 = vpack.c.bf16 %v932, %v930
        %v981 = vpack.c.bf16 %v936, %v934
        %v983 = vsel %vm888, %v978, 0
        %985 = vmatprep.subr.bf16.mxu0 0
        %986 = vmatpush1.bf16.msra.mxu0 %v677
        %987 = vmatprep.subr.bf16.mxu0 0
        %988 = vmatpush1.bf16.msra.mxu0 0
        %989 = vmatprep.subr.bf16.mxu0 0
        %990 = vmatpush1.bf16.msra.mxu0 0
        %991 = vmatprep.subr.bf16.mxu0 0
        %992 = vmatpush1.bf16.msra.mxu0 0
        %993 = vmatprep.subr.bf16.mxu0 0
        %994 = vmatpush1.bf16.msra.mxu0 0
        %995 = vmatprep.subr.bf16.mxu0 0
        %996 = vmatpush1.bf16.msra.mxu0 0
        %997 = vmatprep.subr.bf16.mxu0 0
        %998 = vmatpush1.bf16.msra.mxu0 0
        %999 = vmatprep.subr.bf16.mxu0 0
        %1000 = vmatpush1.bf16.msra.mxu0 0
        %1001 = vmatprep.subr.bf16.mxu0 0
        %1002 = vmatpush1.bf16.msra.mxu0 0
        %1003 = vmatprep.subr.bf16.mxu0 0
        %1004 = vmatpush1.bf16.msra.mxu0 0
        %1005 = vmatprep.subr.bf16.mxu0 0
        %1006 = vmatpush1.bf16.msra.mxu0 0
        %1007 = vmatprep.subr.bf16.mxu0 0
        %1008 = vmatpush1.bf16.msra.mxu0 0
        %1009 = vmatprep.subr.bf16.mxu0 0
        %1010 = vmatpush1.bf16.msra.mxu0 0
        %1011 = vmatprep.subr.bf16.mxu0 0
        %1012 = vmatpush1.bf16.msra.mxu0 0
        %1013 = vmatprep.subr.bf16.mxu0 0
        %1014 = vmatpush1.bf16.msra.mxu0 0
        %1015 = vmatprep.subr.bf16.mxu0 0
        %1016 = vmatpush1.bf16.msra.mxu0 0
        %1017 = vmatprep.mubr.bf16.mxu0 0
        %1018 = vmatmul.mubr.bf16.gmra.mrb[0].mxu0 %v983
        %v1019 = vpop.f32.mrb[0].mxu0
        %v1020 = vadd.f32 0.0, %v1019
        %v1021 = vpop.f32.mrb[0].mxu0
        %v1022 = vpop.f32.mrb[0].mxu0
        %v1023 = vadd.f32 0.0, %v1022
        %v1024 = vpop.f32.mrb[0].mxu0
        %1025 = vdwg.mxu0
        %v1027 = vsel %vm888, %v979, 0
        %1029 = vmatprep.subr.bf16.mxu0 0
        %1030 = vmatpush1.bf16.msra.mxu0 %v678
        %1031 = vmatprep.subr.bf16.mxu0 0
        %1032 = vmatpush1.bf16.msra.mxu0 0
        %1033 = vmatprep.subr.bf16.mxu0 0
        %1034 = vmatpush1.bf16.msra.mxu0 0
        %1035 = vmatprep.subr.bf16.mxu0 0
        %1036 = vmatpush1.bf16.msra.mxu0 0
        %1037 = vmatprep.subr.bf16.mxu0 0
        %1038 = vmatpush1.bf16.msra.mxu0 0
        %1039 = vmatprep.subr.bf16.mxu0 0
        %1040 = vmatpush1.bf16.msra.mxu0 0
        %1041 = vmatprep.subr.bf16.mxu0 0
        %1042 = vmatpush1.bf16.msra.mxu0 0
        %1043 = vmatprep.subr.bf16.mxu0 0
        %1044 = vmatpush1.bf16.msra.mxu0 0
        %1045 = vmatprep.subr.bf16.mxu0 0
        %1046 = vmatpush1.bf16.msra.mxu0 0
        %1047 = vmatprep.subr.bf16.mxu0 0
        %1048 = vmatpush1.bf16.msra.mxu0 0
        %1049 = vmatprep.subr.bf16.mxu0 0
        %1050 = vmatpush1.bf16.msra.mxu0 0
        %1051 = vmatprep.subr.bf16.mxu0 0
        %1052 = vmatpush1.bf16.msra.mxu0 0
        %1053 = vmatprep.subr.bf16.mxu0 0
        %1054 = vmatpush1.bf16.msra.mxu0 0
        %1055 = vmatprep.subr.bf16.mxu0 0
        %1056 = vmatpush1.bf16.msra.mxu0 0
        %1057 = vmatprep.subr.bf16.mxu0 0
        %1058 = vmatpush1.bf16.msra.mxu0 0
        %1059 = vmatprep.subr.bf16.mxu0 0
        %1060 = vmatpush1.bf16.msra.mxu0 0
        %1061 = vmatprep.mubr.bf16.mxu0 0
        %1062 = vmatmul.mubr.bf16.gmra.mrb[0].mxu0 %v1027
        %v1063 = vpop.f32.mrb[0].mxu0
        %v1064 = vadd.f32 0.0, %v1063
        %v1065 = vpop.f32.mrb[0].mxu0
        %v1066 = vpop.f32.mrb[0].mxu0
        %v1067 = vadd.f32 0.0, %v1066
        %v1068 = vpop.f32.mrb[0].mxu0
        %1069 = vdwg.mxu0
        %v1071 = vsel %vm888, %v980, 0
        %1073 = vmatprep.subr.bf16.mxu0 0
        %1074 = vmatpush1.bf16.msra.mxu0 %v679
        %1075 = vmatprep.subr.bf16.mxu0 0
        %1076 = vmatpush1.bf16.msra.mxu0 0
        %1077 = vmatprep.subr.bf16.mxu0 0
        %1078 = vmatpush1.bf16.msra.mxu0 0
        %1079 = vmatprep.subr.bf16.mxu0 0
        %1080 = vmatpush1.bf16.msra.mxu0 0
        %1081 = vmatprep.subr.bf16.mxu0 0
        %1082 = vmatpush1.bf16.msra.mxu0 0
        %1083 = vmatprep.subr.bf16.mxu0 0
        %1084 = vmatpush1.bf16.msra.mxu0 0
        %1085 = vmatprep.subr.bf16.mxu0 0
        %1086 = vmatpush1.bf16.msra.mxu0 0
        %1087 = vmatprep.subr.bf16.mxu0 0
        %1088 = vmatpush1.bf16.msra.mxu0 0
        %1089 = vmatprep.subr.bf16.mxu0 0
        %1090 = vmatpush1.bf16.msra.mxu0 0
        %1091 = vmatprep.subr.bf16.mxu0 0
        %1092 = vmatpush1.bf16.msra.mxu0 0
        %1093 = vmatprep.subr.bf16.mxu0 0
        %1094 = vmatpush1.bf16.msra.mxu0 0
        %1095 = vmatprep.subr.bf16.mxu0 0
        %1096 = vmatpush1.bf16.msra.mxu0 0
        %1097 = vmatprep.subr.bf16.mxu0 0
        %1098 = vmatpush1.bf16.msra.mxu0 0
        %1099 = vmatprep.subr.bf16.mxu0 0
        %1100 = vmatpush1.bf16.msra.mxu0 0
        %1101 = vmatprep.subr.bf16.mxu0 0
        %1102 = vmatpush1.bf16.msra.mxu0 0
        %1103 = vmatprep.subr.bf16.mxu0 0
        %1104 = vmatpush1.bf16.msra.mxu0 0
        %1105 = vmatprep.mubr.bf16.mxu0 0
        %1106 = vmatmul.mubr.bf16.gmra.mrb[0].mxu0 %v1071
        %v1107 = vpop.f32.mrb[0].mxu0
        %v1108 = vadd.f32 0.0, %v1107
        %v1109 = vpop.f32.mrb[0].mxu0
        %v1110 = vpop.f32.mrb[0].mxu0
        %v1111 = vadd.f32 0.0, %v1110
        %v1112 = vpop.f32.mrb[0].mxu0
        %1113 = vdwg.mxu0
        %v1115 = vsel %vm888, %v981, 0
        %1117 = vmatprep.subr.bf16.mxu0 0
        %1118 = vmatpush1.bf16.msra.mxu0 %v680
        %1119 = vmatprep.subr.bf16.mxu0 0
        %1120 = vmatpush1.bf16.msra.mxu0 0
        %1121 = vmatprep.subr.bf16.mxu0 0
        %1122 = vmatpush1.bf16.msra.mxu0 0
        %1123 = vmatprep.subr.bf16.mxu0 0
        %1124 = vmatpush1.bf16.msra.mxu0 0
        %1125 = vmatprep.subr.bf16.mxu0 0
        %1126 = vmatpush1.bf16.msra.mxu0 0
        %1127 = vmatprep.subr.bf16.mxu0 0
        %1128 = vmatpush1.bf16.msra.mxu0 0
        %1129 = vmatprep.subr.bf16.mxu0 0
        %1130 = vmatpush1.bf16.msra.mxu0 0
        %1131 = vmatprep.subr.bf16.mxu0 0
        %1132 = vmatpush1.bf16.msra.mxu0 0
        %1133 = vmatprep.subr.bf16.mxu0 0
        %1134 = vmatpush1.bf16.msra.mxu0 0
        %1135 = vmatprep.subr.bf16.mxu0 0
        %1136 = vmatpush1.bf16.msra.mxu0 0
        %1137 = vmatprep.subr.bf16.mxu0 0
        %1138 = vmatpush1.bf16.msra.mxu0 0
        %1139 = vmatprep.subr.bf16.mxu0 0
        %1140 = vmatpush1.bf16.msra.mxu0 0
        %1141 = vmatprep.subr.bf16.mxu0 0
        %1142 = vmatpush1.bf16.msra.mxu0 0
        %1143 = vmatprep.subr.bf16.mxu0 0
        %1144 = vmatpush1.bf16.msra.mxu0 0
        %1145 = vmatprep.subr.bf16.mxu0 0
        %1146 = vmatpush1.bf16.msra.mxu0 0
        %1147 = vmatprep.subr.bf16.mxu0 0
        %1148 = vmatpush1.bf16.msra.mxu0 0
        %1149 = vmatprep.mubr.bf16.mxu0 0
        %1150 = vmatmul.mubr.bf16.gmra.mrb[0].mxu0 %v1115
        %v1151 = vpop.f32.mrb[0].mxu0
        %v1152 = vadd.f32 0.0, %v1151
        %v1153 = vpop.f32.mrb[0].mxu0
        %v1154 = vpop.f32.mrb[0].mxu0
        %v1155 = vadd.f32 0.0, %v1154
        %v1156 = vpop.f32.mrb[0].mxu0
        %1157 = vdwg.mxu0
        %1158 = vst.msk [vmem:[#allocation7] sm:$0xff] %vm598, %v1020
        %1159 = vst.msk [vmem:[#allocation7 + $0x8] sm:$0xff] %vm598, %v1023
        %1160 = vst.msk [vmem:[#allocation7 + $0x10] sm:$0xff] %vm598, %v1064
        %1161 = vst.msk [vmem:[#allocation7 + $0x18] sm:$0xff] %vm598, %v1067
        %1162 = vst.msk [vmem:[#allocation7 + $0x20] sm:$0xff] %vm598, %v1108
        %1163 = vst.msk [vmem:[#allocation7 + $0x28] sm:$0xff] %vm598, %v1111
        %1164 = vst.msk [vmem:[#allocation7 + $0x30] sm:$0xff] %vm598, %v1152
        %1165 = vst.msk [vmem:[#allocation7 + $0x38] sm:$0xff] %vm598, %v1155
        // While loop
        $region77: #{tpu_custom_call.1} parent=71 // loop_pre_header
          _
        $region78: #{tpu_custom_call.1} parent=71 // loop_header
          %s1167 = sphi 0, %s1169
          %p1168 = scmp.ge.s32.totalorder %s1167, %s35
        $region79: #{tpu_custom_call.1} parent=71 // loop_header_branch
          %1171 = sbr.rel (%p1168) target = $region83
        $region80: #{tpu_custom_call.1} parent=71 // loop_body
          %s1172 = smul.u32 %s1167, 16
          %s1173 = sshra.s32 %s1172, 4
          %s1174 = sand.u32 %s1172, 15
          %s1175 = smul.addr %s1173, 8
          %s1176 = scalar_lea.vmem [#allocation2], %s1175
          %v1177 = vld [vmem:[%s1176] sm:$0xff]
          %v1178 = vld [vmem:[%s1176 + $0x10] sm:$0xff]
          %v1179 = vld [vmem:[%s1176 + $0x20] sm:$0xff]
          %v1180 = vld [vmem:[%s1176 + $0x30] sm:$0xff]
          %s1181 = smul.addr %s1173, 8
          %s1182 = scalar_lea.vmem [#allocation3], %s1181
          %v1183 = vld [vmem:[%s1182] sm:$0xff]
          %v1184 = vld [vmem:[%s1182 + $0x10] sm:$0xff]
          %v1185 = vld [vmem:[%s1182 + $0x20] sm:$0xff]
          %v1186 = vld [vmem:[%s1182 + $0x30] sm:$0xff]
          %v1187 = vld [vmem:[#allocation4] sm:$0xff]
          %v1188 = vld [vmem:[#allocation4 + $0x8] sm:$0xff]
          %v1189 = vld [vmem:[#allocation4 + $0x10] sm:$0xff]
          %v1190 = vld [vmem:[#allocation4 + $0x18] sm:$0xff]
          %v1192 = vsel %vm598, %v1187, 0
          %v1195 = vsel %vm598, %v1177, 0
          %1197 = vmatprep.subr.bf16.mxu0 0
          %1198 = vmatpush1.bf16.xpose.msra.mxu0 %v1195
          %1199 = vmatprep.subr.bf16.mxu0 0
          %1200 = vmatpush1.bf16.xpose.msra.mxu0 0
          %1201 = vmatprep.subr.bf16.mxu0 0
          %1202 = vmatpush1.bf16.xpose.msra.mxu0 0
          %1203 = vmatprep.subr.bf16.mxu0 0
          %1204 = vmatpush1.bf16.xpose.msra.mxu0 0
          %1205 = vmatprep.subr.bf16.mxu0 0
          %1206 = vmatpush1.bf16.xpose.msra.mxu0 0
          %1207 = vmatprep.subr.bf16.mxu0 0
          %1208 = vmatpush1.bf16.xpose.msra.mxu0 0
          %1209 = vmatprep.subr.bf16.mxu0 0
          %1210 = vmatpush1.bf16.xpose.msra.mxu0 0
          %1211 = vmatprep.subr.bf16.mxu0 0
          %1212 = vmatpush1.bf16.xpose.msra.mxu0 0
          %1213 = vmatprep.subr.bf16.mxu0 0
          %1214 = vmatpush1.bf16.xpose.msra.mxu0 0
          %1215 = vmatprep.subr.bf16.mxu0 0
          %1216 = vmatpush1.bf16.xpose.msra.mxu0 0
          %1217 = vmatprep.subr.bf16.mxu0 0
          %1218 = vmatpush1.bf16.xpose.msra.mxu0 0
          %1219 = vmatprep.subr.bf16.mxu0 0
          %1220 = vmatpush1.bf16.xpose.msra.mxu0 0
          %1221 = vmatprep.subr.bf16.mxu0 0
          %1222 = vmatpush1.bf16.xpose.msra.mxu0 0
          %1223 = vmatprep.subr.bf16.mxu0 0
          %1224 = vmatpush1.bf16.xpose.msra.mxu0 0
          %1225 = vmatprep.subr.bf16.mxu0 0
          %1226 = vmatpush1.bf16.xpose.msra.mxu0 0
          %1227 = vmatprep.subr.bf16.mxu0 0
          %1228 = vmatpush1.bf16.xpose.msra.mxu0 0
          %1229 = vmatprep.mubr.bf16.mxu0 0
          %1230 = vmatmul.mubr.bf16.gmra.mrb[0].mxu0 %v1192
          %v1231 = vpop.f32.mrb[0].mxu0
          %v1232 = vadd.f32 0.0, %v1231
          %v1233 = vpop.f32.mrb[0].mxu0
          %v1234 = vpop.f32.mrb[0].mxu0
          %v1235 = vadd.f32 0.0, %v1234
          %v1236 = vpop.f32.mrb[0].mxu0
          %1237 = vdwg.mxu0
          %v1239 = vsel %vm598, %v1188, 0
          %v1242 = vsel %vm598, %v1178, 0
          %1244 = vmatprep.subr.bf16.mxu0 0
          %1245 = vmatpush1.bf16.xpose.msra.mxu0 %v1242
          %1246 = vmatprep.subr.bf16.mxu0 0
          %1247 = vmatpush1.bf16.xpose.msra.mxu0 0
          %1248 = vmatprep.subr.bf16.mxu0 0
          %1249 = vmatpush1.bf16.xpose.msra.mxu0 0
          %1250 = vmatprep.subr.bf16.mxu0 0
          %1251 = vmatpush1.bf16.xpose.msra.mxu0 0
          %1252 = vmatprep.subr.bf16.mxu0 0
          %1253 = vmatpush1.bf16.xpose.msra.mxu0 0
          %1254 = vmatprep.subr.bf16.mxu0 0
          %1255 = vmatpush1.bf16.xpose.msra.mxu0 0
          %1256 = vmatprep.subr.bf16.mxu0 0
          %1257 = vmatpush1.bf16.xpose.msra.mxu0 0
          %1258 = vmatprep.subr.bf16.mxu0 0
          %1259 = vmatpush1.bf16.xpose.msra.mxu0 0
          %1260 = vmatprep.subr.bf16.mxu0 0
          %1261 = vmatpush1.bf16.xpose.msra.mxu0 0
          %1262 = vmatprep.subr.bf16.mxu0 0
          %1263 = vmatpush1.bf16.xpose.msra.mxu0 0
          %1264 = vmatprep.subr.bf16.mxu0 0
          %1265 = vmatpush1.bf16.xpose.msra.mxu0 0
          %1266 = vmatprep.subr.bf16.mxu0 0
          %1267 = vmatpush1.bf16.xpose.msra.mxu0 0
          %1268 = vmatprep.subr.bf16.mxu0 0
          %1269 = vmatpush1.bf16.xpose.msra.mxu0 0
          %1270 = vmatprep.subr.bf16.mxu0 0
          %1271 = vmatpush1.bf16.xpose.msra.mxu0 0
          %1272 = vmatprep.subr.bf16.mxu0 0
          %1273 = vmatpush1.bf16.xpose.msra.mxu0 0
          %1274 = vmatprep.subr.bf16.mxu0 0
          %1275 = vmatpush1.bf16.xpose.msra.mxu0 0
          %1276 = vmatprep.mubr.bf16.mxu0 0
          %1277 = vmatmul.mubr.bf16.gmra.mrb[0].mxu0 %v1239
          %v1278 = vpop.f32.mrb[0].mxu0
          %v1279 = vadd.f32 0.0, %v1278
          %v1280 = vpop.f32.mrb[0].mxu0
          %v1281 = vpop.f32.mrb[0].mxu0
          %v1282 = vadd.f32 0.0, %v1281
          %v1283 = vpop.f32.mrb[0].mxu0
          %1284 = vdwg.mxu0
          %v1286 = vsel %vm598, %v1189, 0
          %v1289 = vsel %vm598, %v1179, 0
          %1291 = vmatprep.subr.bf16.mxu0 0
          %1292 = vmatpush1.bf16.xpose.msra.mxu0 %v1289
          %1293 = vmatprep.subr.bf16.mxu0 0
          %1294 = vmatpush1.bf16.xpose.msra.mxu0 0
          %1295 = vmatprep.subr.bf16.mxu0 0
          %1296 = vmatpush1.bf16.xpose.msra.mxu0 0
          %1297 = vmatprep.subr.bf16.mxu0 0
          %1298 = vmatpush1.bf16.xpose.msra.mxu0 0
          %1299 = vmatprep.subr.bf16.mxu0 0
          %1300 = vmatpush1.bf16.xpose.msra.mxu0 0
          %1301 = vmatprep.subr.bf16.mxu0 0
          %1302 = vmatpush1.bf16.xpose.msra.mxu0 0
          %1303 = vmatprep.subr.bf16.mxu0 0
          %1304 = vmatpush1.bf16.xpose.msra.mxu0 0
          %1305 = vmatprep.subr.bf16.mxu0 0
          %1306 = vmatpush1.bf16.xpose.msra.mxu0 0
          %1307 = vmatprep.subr.bf16.mxu0 0
          %1308 = vmatpush1.bf16.xpose.msra.mxu0 0
          %1309 = vmatprep.subr.bf16.mxu0 0
          %1310 = vmatpush1.bf16.xpose.msra.mxu0 0
          %1311 = vmatprep.subr.bf16.mxu0 0
          %1312 = vmatpush1.bf16.xpose.msra.mxu0 0
          %1313 = vmatprep.subr.bf16.mxu0 0
          %1314 = vmatpush1.bf16.xpose.msra.mxu0 0
          %1315 = vmatprep.subr.bf16.mxu0 0
          %1316 = vmatpush1.bf16.xpose.msra.mxu0 0
          %1317 = vmatprep.subr.bf16.mxu0 0
          %1318 = vmatpush1.bf16.xpose.msra.mxu0 0
          %1319 = vmatprep.subr.bf16.mxu0 0
          %1320 = vmatpush1.bf16.xpose.msra.mxu0 0
          %1321 = vmatprep.subr.bf16.mxu0 0
          %1322 = vmatpush1.bf16.xpose.msra.mxu0 0
          %1323 = vmatprep.mubr.bf16.mxu0 0
          %1324 = vmatmul.mubr.bf16.gmra.mrb[0].mxu0 %v1286
          %v1325 = vpop.f32.mrb[0].mxu0
          %v1326 = vadd.f32 0.0, %v1325
          %v1327 = vpop.f32.mrb[0].mxu0
          %v1328 = vpop.f32.mrb[0].mxu0
          %v1329 = vadd.f32 0.0, %v1328
          %v1330 = vpop.f32.mrb[0].mxu0
          %1331 = vdwg.mxu0
          %v1333 = vsel %vm598, %v1190, 0
          %v1336 = vsel %vm598, %v1180, 0
          %1338 = vmatprep.subr.bf16.mxu0 0
          %1339 = vmatpush1.bf16.xpose.msra.mxu0 %v1336
          %1340 = vmatprep.subr.bf16.mxu0 0
          %1341 = vmatpush1.bf16.xpose.msra.mxu0 0
          %1342 = vmatprep.subr.bf16.mxu0 0
          %1343 = vmatpush1.bf16.xpose.msra.mxu0 0
          %1344 = vmatprep.subr.bf16.mxu0 0
          %1345 = vmatpush1.bf16.xpose.msra.mxu0 0
          %1346 = vmatprep.subr.bf16.mxu0 0
          %1347 = vmatpush1.bf16.xpose.msra.mxu0 0
          %1348 = vmatprep.subr.bf16.mxu0 0
          %1349 = vmatpush1.bf16.xpose.msra.mxu0 0
          %1350 = vmatprep.subr.bf16.mxu0 0
          %1351 = vmatpush1.bf16.xpose.msra.mxu0 0
          %1352 = vmatprep.subr.bf16.mxu0 0
          %1353 = vmatpush1.bf16.xpose.msra.mxu0 0
          %1354 = vmatprep.subr.bf16.mxu0 0
          %1355 = vmatpush1.bf16.xpose.msra.mxu0 0
          %1356 = vmatprep.subr.bf16.mxu0 0
          %1357 = vmatpush1.bf16.xpose.msra.mxu0 0
          %1358 = vmatprep.subr.bf16.mxu0 0
          %1359 = vmatpush1.bf16.xpose.msra.mxu0 0
          %1360 = vmatprep.subr.bf16.mxu0 0
          %1361 = vmatpush1.bf16.xpose.msra.mxu0 0
          %1362 = vmatprep.subr.bf16.mxu0 0
          %1363 = vmatpush1.bf16.xpose.msra.mxu0 0
          %1364 = vmatprep.subr.bf16.mxu0 0
          %1365 = vmatpush1.bf16.xpose.msra.mxu0 0
          %1366 = vmatprep.subr.bf16.mxu0 0
          %1367 = vmatpush1.bf16.xpose.msra.mxu0 0
          %1368 = vmatprep.subr.bf16.mxu0 0
          %1369 = vmatpush1.bf16.xpose.msra.mxu0 0
          %1370 = vmatprep.mubr.bf16.mxu0 0
          %1371 = vmatmul.mubr.bf16.gmra.mrb[0].mxu0 %v1333
          %v1372 = vpop.f32.mrb[0].mxu0
          %v1373 = vadd.f32 0.0, %v1372
          %v1374 = vpop.f32.mrb[0].mxu0
          %v1375 = vpop.f32.mrb[0].mxu0
          %v1376 = vadd.f32 0.0, %v1375
          %v1377 = vpop.f32.mrb[0].mxu0
          %1378 = vdwg.mxu0
          %v1379 = vld [vmem:[#allocation5] sm:$0xff]
          %v1380 = vld [vmem:[#allocation5 + $0x8] sm:$0xff]
          %v1381 = vld [vmem:[#allocation5 + $0x10] sm:$0xff]
          %v1382 = vld [vmem:[#allocation5 + $0x18] sm:$0xff]
          %v1383 = vld [vmem:[#allocation5 + $0x20] sm:$0xff]
          %v1384 = vld [vmem:[#allocation5 + $0x28] sm:$0xff]
          %v1385 = vld [vmem:[#allocation5 + $0x30] sm:$0xff]
          %v1386 = vld [vmem:[#allocation5 + $0x38] sm:$0xff]
          %v1387 = vsel %vm888, %v1232, -inf
          %1388 = vmax.xlane.f32.xlu0 %v1387
          %v1389 = vpop.xlane.xlu0 %1388
          %v1390 = vsel %vm888, %v1235, -inf
          %1391 = vmax.xlane.f32.xlu0 %v1390
          %v1392 = vpop.xlane.xlu0 %1391
          %v1393 = vsel %vm888, %v1279, -inf
          %1394 = vmax.xlane.f32.xlu0 %v1393
          %v1395 = vpop.xlane.xlu0 %1394
          %v1396 = vsel %vm888, %v1282, -inf
          %1397 = vmax.xlane.f32.xlu0 %v1396
          %v1398 = vpop.xlane.xlu0 %1397
          %v1399 = vsel %vm888, %v1326, -inf
          %1400 = vmax.xlane.f32.xlu0 %v1399
          %v1401 = vpop.xlane.xlu0 %1400
          %v1402 = vsel %vm888, %v1329, -inf
          %1403 = vmax.xlane.f32.xlu0 %v1402
          %v1404 = vpop.xlane.xlu0 %1403
          %v1405 = vsel %vm888, %v1373, -inf
          %1406 = vmax.xlane.f32.xlu0 %v1405
          %v1407 = vpop.xlane.xlu0 %1406
          %v1408 = vsel %vm888, %v1376, -inf
          %1409 = vmax.xlane.f32.xlu0 %v1408
          %v1410 = vpop.xlane.xlu0 %1409
          %v1411 = vmax.f32 %v1379, %v1389
          %v1412 = vmax.f32 %v1380, %v1392
          %v1413 = vmax.f32 %v1381, %v1395
          %v1414 = vmax.f32 %v1382, %v1398
          %v1415 = vmax.f32 %v1383, %v1401
          %v1416 = vmax.f32 %v1384, %v1404
          %v1417 = vmax.f32 %v1385, %v1407
          %v1418 = vmax.f32 %v1386, %v1410
          %v1419 = vsub.f32 %v1379, %v1411
          %v1420 = vsub.f32 %v1380, %v1412
          %v1421 = vsub.f32 %v1381, %v1413
          %v1422 = vsub.f32 %v1382, %v1414
          %v1423 = vsub.f32 %v1383, %v1415
          %v1424 = vsub.f32 %v1384, %v1416
          %v1425 = vsub.f32 %v1385, %v1417
          %v1426 = vsub.f32 %v1386, %v1418
          %v1427 = vmul.f32 %v1419, 1.442695
          %v1428 = vpow.pop %v1427
          %v1429 = vmul.f32 %v1420, 1.442695
          %v1430 = vpow.pop %v1429
          %v1431 = vmul.f32 %v1421, 1.442695
          %v1432 = vpow.pop %v1431
          %v1433 = vmul.f32 %v1422, 1.442695
          %v1434 = vpow.pop %v1433
          %v1435 = vmul.f32 %v1423, 1.442695
          %v1436 = vpow.pop %v1435
          %v1437 = vmul.f32 %v1424, 1.442695
          %v1438 = vpow.pop %v1437
          %v1439 = vmul.f32 %v1425, 1.442695
          %v1440 = vpow.pop %v1439
          %v1441 = vmul.f32 %v1426, 1.442695
          %v1442 = vpow.pop %v1441
          %1444 = vset.pattern.permute.xlu0 0
          %1445 = vperm.xlu0 %1444, %v1411
          %v1446 = vpop.permute.xlu0 %1445
          %1449 = vset.pattern.permute.xlu0 0
          %1450 = vperm.xlu0 %1449, %v1412
          %v1451 = vpop.permute.xlu0 %1450
          %1454 = vset.pattern.permute.xlu0 0
          %1455 = vperm.xlu0 %1454, %v1413
          %v1456 = vpop.permute.xlu0 %1455
          %1459 = vset.pattern.permute.xlu0 0
          %1460 = vperm.xlu0 %1459, %v1414
          %v1461 = vpop.permute.xlu0 %1460
          %1464 = vset.pattern.permute.xlu0 0
          %1465 = vperm.xlu0 %1464, %v1415
          %v1466 = vpop.permute.xlu0 %1465
          %1469 = vset.pattern.permute.xlu0 0
          %1470 = vperm.xlu0 %1469, %v1416
          %v1471 = vpop.permute.xlu0 %1470
          %1474 = vset.pattern.permute.xlu0 0
          %1475 = vperm.xlu0 %1474, %v1417
          %v1476 = vpop.permute.xlu0 %1475
          %1479 = vset.pattern.permute.xlu0 0
          %1480 = vperm.xlu0 %1479, %v1418
          %v1481 = vpop.permute.xlu0 %1480
          %v1483 = vsub.f32 %v1232, %v1446
          %v1484 = vsub.f32 %v1235, %v1451
          %v1485 = vsub.f32 %v1279, %v1456
          %v1486 = vsub.f32 %v1282, %v1461
          %v1487 = vsub.f32 %v1326, %v1466
          %v1488 = vsub.f32 %v1329, %v1471
          %v1489 = vsub.f32 %v1373, %v1476
          %v1490 = vsub.f32 %v1376, %v1481
          %v1491 = vmul.f32 %v1483, 1.442695
          %v1492 = vpow.pop %v1491
          %v1493 = vmul.f32 %v1484, 1.442695
          %v1494 = vpow.pop %v1493
          %v1495 = vmul.f32 %v1485, 1.442695
          %v1496 = vpow.pop %v1495
          %v1497 = vmul.f32 %v1486, 1.442695
          %v1498 = vpow.pop %v1497
          %v1499 = vmul.f32 %v1487, 1.442695
          %v1500 = vpow.pop %v1499
          %v1501 = vmul.f32 %v1488, 1.442695
          %v1502 = vpow.pop %v1501
          %v1503 = vmul.f32 %v1489, 1.442695
          %v1504 = vpow.pop %v1503
          %v1505 = vmul.f32 %v1490, 1.442695
          %v1506 = vpow.pop %v1505
          %v1507 = vld [vmem:[#allocation6] sm:$0xff]
          %v1508 = vld [vmem:[#allocation6 + $0x8] sm:$0xff]
          %v1509 = vld [vmem:[#allocation6 + $0x10] sm:$0xff]
          %v1510 = vld [vmem:[#allocation6 + $0x18] sm:$0xff]
          %v1511 = vld [vmem:[#allocation6 + $0x20] sm:$0xff]
          %v1512 = vld [vmem:[#allocation6 + $0x28] sm:$0xff]
          %v1513 = vld [vmem:[#allocation6 + $0x30] sm:$0xff]
          %v1514 = vld [vmem:[#allocation6 + $0x38] sm:$0xff]
          %v1515 = vmul.f32 %v1428, %v1507
          %v1516 = vmul.f32 %v1430, %v1508
          %v1517 = vmul.f32 %v1432, %v1509
          %v1518 = vmul.f32 %v1434, %v1510
          %v1519 = vmul.f32 %v1436, %v1511
          %v1520 = vmul.f32 %v1438, %v1512
          %v1521 = vmul.f32 %v1440, %v1513
          %v1522 = vmul.f32 %v1442, %v1514
          %v1523 = vsel %vm888, %v1492, 0.0
          %1524 = vadd.xlane.f32.xlu0 %v1523
          %v1525 = vpop.xlane.xlu0 %1524
          %v1526 = vsel %vm888, %v1494, 0.0
          %1527 = vadd.xlane.f32.xlu0 %v1526
          %v1528 = vpop.xlane.xlu0 %1527
          %v1529 = vsel %vm888, %v1496, 0.0
          %1530 = vadd.xlane.f32.xlu0 %v1529
          %v1531 = vpop.xlane.xlu0 %1530
          %v1532 = vsel %vm888, %v1498, 0.0
          %1533 = vadd.xlane.f32.xlu0 %v1532
          %v1534 = vpop.xlane.xlu0 %1533
          %v1535 = vsel %vm888, %v1500, 0.0
          %1536 = vadd.xlane.f32.xlu0 %v1535
          %v1537 = vpop.xlane.xlu0 %1536
          %v1538 = vsel %vm888, %v1502, 0.0
          %1539 = vadd.xlane.f32.xlu0 %v1538
          %v1540 = vpop.xlane.xlu0 %1539
          %v1541 = vsel %vm888, %v1504, 0.0
          %1542 = vadd.xlane.f32.xlu0 %v1541
          %v1543 = vpop.xlane.xlu0 %1542
          %v1544 = vsel %vm888, %v1506, 0.0
          %1545 = vadd.xlane.f32.xlu0 %v1544
          %v1546 = vpop.xlane.xlu0 %1545
          %v1547 = vadd.f32 %v1515, %v1525
          %v1548 = vadd.f32 %v1516, %v1528
          %v1549 = vadd.f32 %v1517, %v1531
          %v1550 = vadd.f32 %v1518, %v1534
          %v1551 = vadd.f32 %v1519, %v1537
          %v1552 = vadd.f32 %v1520, %v1540
          %v1553 = vadd.f32 %v1521, %v1543
          %v1554 = vadd.f32 %v1522, %v1546
          %1555 = vst.msk [vmem:[#allocation6] sm:$0xff] %vm937, %v1547
          %1556 = vst.msk [vmem:[#allocation6 + $0x8] sm:$0xff] %vm937, %v1548
          %1557 = vst.msk [vmem:[#allocation6 + $0x10] sm:$0xff] %vm937, %v1549
          %1558 = vst.msk [vmem:[#allocation6 + $0x18] sm:$0xff] %vm937, %v1550
          %1559 = vst.msk [vmem:[#allocation6 + $0x20] sm:$0xff] %vm937, %v1551
          %1560 = vst.msk [vmem:[#allocation6 + $0x28] sm:$0xff] %vm937, %v1552
          %1561 = vst.msk [vmem:[#allocation6 + $0x30] sm:$0xff] %vm937, %v1553
          %1562 = vst.msk [vmem:[#allocation6 + $0x38] sm:$0xff] %vm937, %v1554
          %v1563 = vld [vmem:[#allocation7] sm:$0xff]
          %v1564 = vld [vmem:[#allocation7 + $0x8] sm:$0xff]
          %v1565 = vld [vmem:[#allocation7 + $0x10] sm:$0xff]
          %v1566 = vld [vmem:[#allocation7 + $0x18] sm:$0xff]
          %v1567 = vld [vmem:[#allocation7 + $0x20] sm:$0xff]
          %v1568 = vld [vmem:[#allocation7 + $0x28] sm:$0xff]
          %v1569 = vld [vmem:[#allocation7 + $0x30] sm:$0xff]
          %v1570 = vld [vmem:[#allocation7 + $0x38] sm:$0xff]
          %1572 = vset.pattern.permute.xlu0 0
          %1573 = vperm.xlu0 %1572, %v1428
          %v1574 = vpop.permute.xlu0 %1573
          %1577 = vset.pattern.permute.xlu0 0
          %1578 = vperm.xlu0 %1577, %v1430
          %v1579 = vpop.permute.xlu0 %1578
          %1582 = vset.pattern.permute.xlu0 0
          %1583 = vperm.xlu0 %1582, %v1432
          %v1584 = vpop.permute.xlu0 %1583
          %1587 = vset.pattern.permute.xlu0 0
          %1588 = vperm.xlu0 %1587, %v1434
          %v1589 = vpop.permute.xlu0 %1588
          %1592 = vset.pattern.permute.xlu0 0
          %1593 = vperm.xlu0 %1592, %v1436
          %v1594 = vpop.permute.xlu0 %1593
          %1597 = vset.pattern.permute.xlu0 0
          %1598 = vperm.xlu0 %1597, %v1438
          %v1599 = vpop.permute.xlu0 %1598
          %1602 = vset.pattern.permute.xlu0 0
          %1603 = vperm.xlu0 %1602, %v1440
          %v1604 = vpop.permute.xlu0 %1603
          %1607 = vset.pattern.permute.xlu0 0
          %1608 = vperm.xlu0 %1607, %v1442
          %v1609 = vpop.permute.xlu0 %1608
          %v1611 = vmul.f32 %v1574, %v1563
          %v1612 = vmul.f32 %v1579, %v1564
          %v1613 = vmul.f32 %v1584, %v1565
          %v1614 = vmul.f32 %v1589, %v1566
          %v1615 = vmul.f32 %v1594, %v1567
          %v1616 = vmul.f32 %v1599, %v1568
          %v1617 = vmul.f32 %v1604, %v1569
          %v1618 = vmul.f32 %v1609, %v1570
          %v1619 = vpack.c.bf16 %v1494, %v1492
          %v1620 = vpack.c.bf16 %v1498, %v1496
          %v1621 = vpack.c.bf16 %v1502, %v1500
          %v1622 = vpack.c.bf16 %v1506, %v1504
          %v1624 = vsel %vm888, %v1619, 0
          %1626 = vmatprep.subr.bf16.mxu0 0
          %1627 = vmatpush1.bf16.msra.mxu0 %v1183
          %1628 = vmatprep.subr.bf16.mxu0 0
          %1629 = vmatpush1.bf16.msra.mxu0 0
          %1630 = vmatprep.subr.bf16.mxu0 0
          %1631 = vmatpush1.bf16.msra.mxu0 0
          %1632 = vmatprep.subr.bf16.mxu0 0
          %1633 = vmatpush1.bf16.msra.mxu0 0
          %1634 = vmatprep.subr.bf16.mxu0 0
          %1635 = vmatpush1.bf16.msra.mxu0 0
          %1636 = vmatprep.subr.bf16.mxu0 0
          %1637 = vmatpush1.bf16.msra.mxu0 0
          %1638 = vmatprep.subr.bf16.mxu0 0
          %1639 = vmatpush1.bf16.msra.mxu0 0
          %1640 = vmatprep.subr.bf16.mxu0 0
          %1641 = vmatpush1.bf16.msra.mxu0 0
          %1642 = vmatprep.subr.bf16.mxu0 0
          %1643 = vmatpush1.bf16.msra.mxu0 0
          %1644 = vmatprep.subr.bf16.mxu0 0
          %1645 = vmatpush1.bf16.msra.mxu0 0
          %1646 = vmatprep.subr.bf16.mxu0 0
          %1647 = vmatpush1.bf16.msra.mxu0 0
          %1648 = vmatprep.subr.bf16.mxu0 0
          %1649 = vmatpush1.bf16.msra.mxu0 0
          %1650 = vmatprep.subr.bf16.mxu0 0
          %1651 = vmatpush1.bf16.msra.mxu0 0
          %1652 = vmatprep.subr.bf16.mxu0 0
          %1653 = vmatpush1.bf16.msra.mxu0 0
          %1654 = vmatprep.subr.bf16.mxu0 0
          %1655 = vmatpush1.bf16.msra.mxu0 0
          %1656 = vmatprep.subr.bf16.mxu0 0
          %1657 = vmatpush1.bf16.msra.mxu0 0
          %1658 = vmatprep.mubr.bf16.mxu0 0
          %1659 = vmatmul.mubr.bf16.gmra.mrb[0].mxu0 %v1624
          %v1660 = vpop.f32.mrb[0].mxu0
          %v1661 = vadd.f32 0.0, %v1660
          %v1662 = vpop.f32.mrb[0].mxu0
          %v1663 = vpop.f32.mrb[0].mxu0
          %v1664 = vadd.f32 0.0, %v1663
          %v1665 = vpop.f32.mrb[0].mxu0
          %1666 = vdwg.mxu0
          %v1668 = vsel %vm888, %v1620, 0
          %1670 = vmatprep.subr.bf16.mxu0 0
          %1671 = vmatpush1.bf16.msra.mxu0 %v1184
          %1672 = vmatprep.subr.bf16.mxu0 0
          %1673 = vmatpush1.bf16.msra.mxu0 0
          %1674 = vmatprep.subr.bf16.mxu0 0
          %1675 = vmatpush1.bf16.msra.mxu0 0
          %1676 = vmatprep.subr.bf16.mxu0 0
          %1677 = vmatpush1.bf16.msra.mxu0 0
          %1678 = vmatprep.subr.bf16.mxu0 0
          %1679 = vmatpush1.bf16.msra.mxu0 0
          %1680 = vmatprep.subr.bf16.mxu0 0
          %1681 = vmatpush1.bf16.msra.mxu0 0
          %1682 = vmatprep.subr.bf16.mxu0 0
          %1683 = vmatpush1.bf16.msra.mxu0 0
          %1684 = vmatprep.subr.bf16.mxu0 0
          %1685 = vmatpush1.bf16.msra.mxu0 0
          %1686 = vmatprep.subr.bf16.mxu0 0
          %1687 = vmatpush1.bf16.msra.mxu0 0
          %1688 = vmatprep.subr.bf16.mxu0 0
          %1689 = vmatpush1.bf16.msra.mxu0 0
          %1690 = vmatprep.subr.bf16.mxu0 0
          %1691 = vmatpush1.bf16.msra.mxu0 0
          %1692 = vmatprep.subr.bf16.mxu0 0
          %1693 = vmatpush1.bf16.msra.mxu0 0
          %1694 = vmatprep.subr.bf16.mxu0 0
          %1695 = vmatpush1.bf16.msra.mxu0 0
          %1696 = vmatprep.subr.bf16.mxu0 0
          %1697 = vmatpush1.bf16.msra.mxu0 0
          %1698 = vmatprep.subr.bf16.mxu0 0
          %1699 = vmatpush1.bf16.msra.mxu0 0
          %1700 = vmatprep.subr.bf16.mxu0 0
          %1701 = vmatpush1.bf16.msra.mxu0 0
          %1702 = vmatprep.mubr.bf16.mxu0 0
          %1703 = vmatmul.mubr.bf16.gmra.mrb[0].mxu0 %v1668
          %v1704 = vpop.f32.mrb[0].mxu0
          %v1705 = vadd.f32 0.0, %v1704
          %v1706 = vpop.f32.mrb[0].mxu0
          %v1707 = vpop.f32.mrb[0].mxu0
          %v1708 = vadd.f32 0.0, %v1707
          %v1709 = vpop.f32.mrb[0].mxu0
          %1710 = vdwg.mxu0
          %v1712 = vsel %vm888, %v1621, 0
          %1714 = vmatprep.subr.bf16.mxu0 0
          %1715 = vmatpush1.bf16.msra.mxu0 %v1185
          %1716 = vmatprep.subr.bf16.mxu0 0
          %1717 = vmatpush1.bf16.msra.mxu0 0
          %1718 = vmatprep.subr.bf16.mxu0 0
          %1719 = vmatpush1.bf16.msra.mxu0 0
          %1720 = vmatprep.subr.bf16.mxu0 0
          %1721 = vmatpush1.bf16.msra.mxu0 0
          %1722 = vmatprep.subr.bf16.mxu0 0
          %1723 = vmatpush1.bf16.msra.mxu0 0
          %1724 = vmatprep.subr.bf16.mxu0 0
          %1725 = vmatpush1.bf16.msra.mxu0 0
          %1726 = vmatprep.subr.bf16.mxu0 0
          %1727 = vmatpush1.bf16.msra.mxu0 0
          %1728 = vmatprep.subr.bf16.mxu0 0
          %1729 = vmatpush1.bf16.msra.mxu0 0
          %1730 = vmatprep.subr.bf16.mxu0 0
          %1731 = vmatpush1.bf16.msra.mxu0 0
          %1732 = vmatprep.subr.bf16.mxu0 0
          %1733 = vmatpush1.bf16.msra.mxu0 0
          %1734 = vmatprep.subr.bf16.mxu0 0
          %1735 = vmatpush1.bf16.msra.mxu0 0
          %1736 = vmatprep.subr.bf16.mxu0 0
          %1737 = vmatpush1.bf16.msra.mxu0 0
          %1738 = vmatprep.subr.bf16.mxu0 0
          %1739 = vmatpush1.bf16.msra.mxu0 0
          %1740 = vmatprep.subr.bf16.mxu0 0
          %1741 = vmatpush1.bf16.msra.mxu0 0
          %1742 = vmatprep.subr.bf16.mxu0 0
          %1743 = vmatpush1.bf16.msra.mxu0 0
          %1744 = vmatprep.subr.bf16.mxu0 0
          %1745 = vmatpush1.bf16.msra.mxu0 0
          %1746 = vmatprep.mubr.bf16.mxu0 0
          %1747 = vmatmul.mubr.bf16.gmra.mrb[0].mxu0 %v1712
          %v1748 = vpop.f32.mrb[0].mxu0
          %v1749 = vadd.f32 0.0, %v1748
          %v1750 = vpop.f32.mrb[0].mxu0
          %v1751 = vpop.f32.mrb[0].mxu0
          %v1752 = vadd.f32 0.0, %v1751
          %v1753 = vpop.f32.mrb[0].mxu0
          %1754 = vdwg.mxu0
          %v1756 = vsel %vm888, %v1622, 0
          %1758 = vmatprep.subr.bf16.mxu0 0
          %1759 = vmatpush1.bf16.msra.mxu0 %v1186
          %1760 = vmatprep.subr.bf16.mxu0 0
          %1761 = vmatpush1.bf16.msra.mxu0 0
          %1762 = vmatprep.subr.bf16.mxu0 0
          %1763 = vmatpush1.bf16.msra.mxu0 0
          %1764 = vmatprep.subr.bf16.mxu0 0
          %1765 = vmatpush1.bf16.msra.mxu0 0
          %1766 = vmatprep.subr.bf16.mxu0 0
          %1767 = vmatpush1.bf16.msra.mxu0 0
          %1768 = vmatprep.subr.bf16.mxu0 0
          %1769 = vmatpush1.bf16.msra.mxu0 0
          %1770 = vmatprep.subr.bf16.mxu0 0
          %1771 = vmatpush1.bf16.msra.mxu0 0
          %1772 = vmatprep.subr.bf16.mxu0 0
          %1773 = vmatpush1.bf16.msra.mxu0 0
          %1774 = vmatprep.subr.bf16.mxu0 0
          %1775 = vmatpush1.bf16.msra.mxu0 0
          %1776 = vmatprep.subr.bf16.mxu0 0
          %1777 = vmatpush1.bf16.msra.mxu0 0
          %1778 = vmatprep.subr.bf16.mxu0 0
          %1779 = vmatpush1.bf16.msra.mxu0 0
          %1780 = vmatprep.subr.bf16.mxu0 0
          %1781 = vmatpush1.bf16.msra.mxu0 0
          %1782 = vmatprep.subr.bf16.mxu0 0
          %1783 = vmatpush1.bf16.msra.mxu0 0
          %1784 = vmatprep.subr.bf16.mxu0 0
          %1785 = vmatpush1.bf16.msra.mxu0 0
          %1786 = vmatprep.subr.bf16.mxu0 0
          %1787 = vmatpush1.bf16.msra.mxu0 0
          %1788 = vmatprep.subr.bf16.mxu0 0
          %1789 = vmatpush1.bf16.msra.mxu0 0
          %1790 = vmatprep.mubr.bf16.mxu0 0
          %1791 = vmatmul.mubr.bf16.gmra.mrb[0].mxu0 %v1756
          %v1792 = vpop.f32.mrb[0].mxu0
          %v1793 = vadd.f32 0.0, %v1792
          %v1794 = vpop.f32.mrb[0].mxu0
          %v1795 = vpop.f32.mrb[0].mxu0
          %v1796 = vadd.f32 0.0, %v1795
          %v1797 = vpop.f32.mrb[0].mxu0
          %1798 = vdwg.mxu0
          %v1799 = vadd.f32 %v1611, %v1661
          %v1800 = vadd.f32 %v1612, %v1664
          %v1801 = vadd.f32 %v1613, %v1705
          %v1802 = vadd.f32 %v1614, %v1708
          %v1803 = vadd.f32 %v1615, %v1749
          %v1804 = vadd.f32 %v1616, %v1752
          %v1805 = vadd.f32 %v1617, %v1793
          %v1806 = vadd.f32 %v1618, %v1796
          %1807 = vst.msk [vmem:[#allocation7] sm:$0xff] %vm598, %v1799
          %1808 = vst.msk [vmem:[#allocation7 + $0x8] sm:$0xff] %vm598, %v1800
          %1809 = vst.msk [vmem:[#allocation7 + $0x10] sm:$0xff] %vm598, %v1801
          %1810 = vst.msk [vmem:[#allocation7 + $0x18] sm:$0xff] %vm598, %v1802
          %1811 = vst.msk [vmem:[#allocation7 + $0x20] sm:$0xff] %vm598, %v1803
          %1812 = vst.msk [vmem:[#allocation7 + $0x28] sm:$0xff] %vm598, %v1804
          %1813 = vst.msk [vmem:[#allocation7 + $0x30] sm:$0xff] %vm598, %v1805
          %1814 = vst.msk [vmem:[#allocation7 + $0x38] sm:$0xff] %vm598, %v1806
          %1815 = vst.msk [vmem:[#allocation5] sm:$0xff] %vm937, %v1411
          %1816 = vst.msk [vmem:[#allocation5 + $0x8] sm:$0xff] %vm937, %v1412
          %1817 = vst.msk [vmem:[#allocation5 + $0x10] sm:$0xff] %vm937, %v1413
          %1818 = vst.msk [vmem:[#allocation5 + $0x18] sm:$0xff] %vm937, %v1414
          %1819 = vst.msk [vmem:[#allocation5 + $0x20] sm:$0xff] %vm937, %v1415
          %1820 = vst.msk [vmem:[#allocation5 + $0x28] sm:$0xff] %vm937, %v1416
          %1821 = vst.msk [vmem:[#allocation5 + $0x30] sm:$0xff] %vm937, %v1417
          %1822 = vst.msk [vmem:[#allocation5 + $0x38] sm:$0xff] %vm937, %v1418
        $region81: #{tpu_custom_call.1} parent=71 // loop_footer
          %s1169 = sadd.s32 %s1167, 1
        $region82: #{tpu_custom_call.1} parent=71 // loop_footer_branch
          %1166 = sbr.rel target = $region78
        $region83: #{tpu_custom_call.1} parent=71 // loop_exit
          _
        %v1823 = vld [vmem:[#allocation7] sm:$0xff]
        %v1824 = vld [vmem:[#allocation7 + $0x8] sm:$0xff]
        %v1825 = vld [vmem:[#allocation7 + $0x10] sm:$0xff]
        %v1826 = vld [vmem:[#allocation7 + $0x18] sm:$0xff]
        %v1827 = vld [vmem:[#allocation7 + $0x20] sm:$0xff]
        %v1828 = vld [vmem:[#allocation7 + $0x28] sm:$0xff]
        %v1829 = vld [vmem:[#allocation7 + $0x30] sm:$0xff]
        %v1830 = vld [vmem:[#allocation7 + $0x38] sm:$0xff]
        %v1831 = vld [vmem:[#allocation6] sm:$0xff]
        %v1832 = vld [vmem:[#allocation6 + $0x8] sm:$0xff]
        %v1833 = vld [vmem:[#allocation6 + $0x10] sm:$0xff]
        %v1834 = vld [vmem:[#allocation6 + $0x18] sm:$0xff]
        %v1835 = vld [vmem:[#allocation6 + $0x20] sm:$0xff]
        %v1836 = vld [vmem:[#allocation6 + $0x28] sm:$0xff]
        %v1837 = vld [vmem:[#allocation6 + $0x30] sm:$0xff]
        %v1838 = vld [vmem:[#allocation6 + $0x38] sm:$0xff]
        %v1839 = vrcp.pop %v1831
        %v1840 = vrcp.pop %v1832
        %v1841 = vrcp.pop %v1833
        %v1842 = vrcp.pop %v1834
        %v1843 = vrcp.pop %v1835
        %v1844 = vrcp.pop %v1836
        %v1845 = vrcp.pop %v1837
        %v1846 = vrcp.pop %v1838
        %1848 = vset.pattern.permute.xlu0 0
        %1849 = vperm.xlu0 %1848, %v1839
        %v1850 = vpop.permute.xlu0 %1849
        %1853 = vset.pattern.permute.xlu0 0
        %1854 = vperm.xlu0 %1853, %v1840
        %v1855 = vpop.permute.xlu0 %1854
        %1858 = vset.pattern.permute.xlu0 0
        %1859 = vperm.xlu0 %1858, %v1841
        %v1860 = vpop.permute.xlu0 %1859
        %1863 = vset.pattern.permute.xlu0 0
        %1864 = vperm.xlu0 %1863, %v1842
        %v1865 = vpop.permute.xlu0 %1864
        %1868 = vset.pattern.permute.xlu0 0
        %1869 = vperm.xlu0 %1868, %v1843
        %v1870 = vpop.permute.xlu0 %1869
        %1873 = vset.pattern.permute.xlu0 0
        %1874 = vperm.xlu0 %1873, %v1844
        %v1875 = vpop.permute.xlu0 %1874
        %1878 = vset.pattern.permute.xlu0 0
        %1879 = vperm.xlu0 %1878, %v1845
        %v1880 = vpop.permute.xlu0 %1879
        %1883 = vset.pattern.permute.xlu0 0
        %1884 = vperm.xlu0 %1883, %v1846
        %v1885 = vpop.permute.xlu0 %1884
        %v1887 = vmul.f32 %v1823, %v1850
        %v1888 = vmul.f32 %v1824, %v1855
        %v1889 = vmul.f32 %v1825, %v1860
        %v1890 = vmul.f32 %v1826, %v1865
        %v1891 = vmul.f32 %v1827, %v1870
        %v1892 = vmul.f32 %v1828, %v1875
        %v1893 = vmul.f32 %v1829, %v1880
        %v1894 = vmul.f32 %v1830, %v1885
        %v1895 = vpack.c.bf16 %v1888, %v1887
        %1896 = vst.msk [vmem:[#allocation8] sm:$0xff] %vm598, %v1895
        %v1897 = vpack.c.bf16 %v1890, %v1889
        %1899 = vrot.lane.b32.xlu0 %v1897, 8
        %v1900 = vpop.permute.xlu0 %1899
        %vm1902 = vcmask 130112
        %1903 = vst.msk [vmem:[#allocation8] sm:$0xff] %vm1902, %v1900
        %v1904 = vpack.c.bf16 %v1892, %v1891
        %1906 = vrot.lane.b32.xlu0 %v1904, 16
        %v1907 = vpop.permute.xlu0 %1906
        %vm1909 = vcmask 195712
        %1910 = vst.msk [vmem:[#allocation8] sm:$0xff] %vm1909, %v1907
        %v1911 = vpack.c.bf16 %v1894, %v1893
        %1913 = vrot.lane.b32.xlu0 %v1911, 24
        %v1914 = vpop.permute.xlu0 %1913
        %vm1916 = vcmask 261312
        %1917 = vst.msk [vmem:[#allocation8] sm:$0xff] %vm1916, %v1914
        %v1918 = vld [vmem:[#allocation8] sm:$0xff]
        %v1919 = vld [vmem:[%s5] sm:$0xf]
        %v1920 = vld [vmem:[%s5 + $0x4] sm:$0xf]
        %v1921 = vld [vmem:[%s5 + $0x8] sm:$0xf]
        %v1922 = vld [vmem:[%s5 + $0xc] sm:$0xf]
        %v1923 = vld [vmem:[%s6] sm:$0x1]
        %v1925 = vlaneseq
        %v1926 = vshrl.u32 %v1925, 7
        %v1927 = vsub.s32 0, %v1926
        %v1928 = vrot.slane %v1923, %v1927
        %v1934 = vunpack.c.l.b16 %v1919
        %v1935 = vunpack.c.l.b16 %v1920
        %v1936 = vunpack.c.l.b16 %v1921
        %v1937 = vunpack.c.l.b16 %v1922
        %v1938 = vpack.c.b16 %v1935, %v1934
        %v1939 = vpack.c.b16 %v1937, %v1936
        %v1943 = vsel %vm485, %v1918, 0
        %1945 = vmatprep.subr.bf16.mxu0 0
        %1946 = vmatpush1.bf16.msra.mxu0 %v1938
        %1947 = vmatprep.subr.bf16.mxu0 0
        %1948 = vmatpush1.bf16.msra.mxu0 %v1939
        %1949 = vmatprep.subr.bf16.mxu0 0
        %1950 = vmatpush1.bf16.msra.mxu0 0
        %1951 = vmatprep.subr.bf16.mxu0 0
        %1952 = vmatpush1.bf16.msra.mxu0 0
        %1953 = vmatprep.subr.bf16.mxu0 0
        %1954 = vmatpush1.bf16.msra.mxu0 0
        %1955 = vmatprep.subr.bf16.mxu0 0
        %1956 = vmatpush1.bf16.msra.mxu0 0
        %1957 = vmatprep.subr.bf16.mxu0 0
        %1958 = vmatpush1.bf16.msra.mxu0 0
        %1959 = vmatprep.subr.bf16.mxu0 0
        %1960 = vmatpush1.bf16.msra.mxu0 0
        %1961 = vmatprep.subr.bf16.mxu0 0
        %1962 = vmatpush1.bf16.msra.mxu0 0
        %1963 = vmatprep.subr.bf16.mxu0 0
        %1964 = vmatpush1.bf16.msra.mxu0 0
        %1965 = vmatprep.subr.bf16.mxu0 0
        %1966 = vmatpush1.bf16.msra.mxu0 0
        %1967 = vmatprep.subr.bf16.mxu0 0
        %1968 = vmatpush1.bf16.msra.mxu0 0
        %1969 = vmatprep.subr.bf16.mxu0 0
        %1970 = vmatpush1.bf16.msra.mxu0 0
        %1971 = vmatprep.subr.bf16.mxu0 0
        %1972 = vmatpush1.bf16.msra.mxu0 0
        %1973 = vmatprep.subr.bf16.mxu0 0
        %1974 = vmatpush1.bf16.msra.mxu0 0
        %1975 = vmatprep.subr.bf16.mxu0 0
        %1976 = vmatpush1.bf16.msra.mxu0 0
        %1977 = vmatprep.mubr.bf16.mxu0 0
        %1978 = vmatmul.mubr.bf16.gmra.mrb[0].mxu0 %v1943
        %v1979 = vpop.f32.mrb[0].mxu0
        %v1980 = vadd.f32 %v1928, %v1979
        %v1981 = vpop.f32.mrb[0].mxu0
        %v1982 = vpop.f32.mrb[0].mxu0
        %v1983 = vadd.f32 %v1928, %v1982
        %v1984 = vpop.f32.mrb[0].mxu0
        %1985 = vdwg.mxu0
        %v1986 = vadd.f32 %v481, %v1980
        %v1987 = vadd.f32 %v482, %v1983
        %v1988 = vld [vmem:[%s7] sm:$0x1]
        %v1989 = vld [vmem:[%s8] sm:$0x1]
        %v1990 = vsel %vm485, %v1986, 0.0
        %1991 = vadd.xlane.f32.xlu0 %v1990
        %v1992 = vpop.xlane.xlu0 %1991
        %v1993 = vsel %vm485, %v1987, 0.0
        %1994 = vadd.xlane.f32.xlu0 %v1993
        %v1995 = vpop.xlane.xlu0 %1994
        %v1996 = vmul.f32 %v1992, %v492
        %v1997 = vmul.f32 %v1995, %v492
        %v1998 = vsub.f32 %v1986, %v1996
        %v1999 = vsub.f32 %v1987, %v1997
        %v2000 = vmul.f32 %v1998, %v1998
        %v2001 = vmul.f32 %v1999, %v1999
        %v2002 = vsel %vm485, %v2000, 0.0
        %2003 = vadd.xlane.f32.xlu0 %v2002
        %v2004 = vpop.xlane.xlu0 %2003
        %v2005 = vsel %vm485, %v2001, 0.0
        %2006 = vadd.xlane.f32.xlu0 %v2005
        %v2007 = vpop.xlane.xlu0 %2006
        %v2008 = vmul.f32 %v2004, %v492
        %v2009 = vmul.f32 %v2007, %v492
        %v2010 = vadd.f32 %v2008, 1e-05
        %v2011 = vadd.f32 %v2009, 1e-05
        %v2012 = vrsqrt.pop %v2010
        %v2013 = vrsqrt.pop %v2011
        %v2014 = vmul.f32 %v1998, %v2012
        %v2015 = vmul.f32 %v1999, %v2013
        %v2017 = vlaneseq
        %v2018 = vshrl.u32 %v2017, 7
        %v2019 = vsub.s32 0, %v2018
        %v2020 = vrot.slane %v1988, %v2019
        %v2022 = vmul.f32 %v2014, %v2020
        %v2023 = vmul.f32 %v2015, %v2020
        %v2025 = vlaneseq
        %v2026 = vshrl.u32 %v2025, 7
        %v2027 = vsub.s32 0, %v2026
        %v2028 = vrot.slane %v1989, %v2027
        %v2030 = vadd.f32 %v2022, %v2028
        %v2031 = vadd.f32 %v2023, %v2028
        %v2032 = vpack.c.bf16 %v2031, %v2030
        %v2033 = vld [vmem:[%s9] sm:$0xf]
        %v2034 = vld [vmem:[%s9 + $0x4] sm:$0xf]
        %v2035 = vld [vmem:[%s9 + $0x8] sm:$0xf]
        %v2036 = vld [vmem:[%s9 + $0xc] sm:$0xf]
        %v2037 = vld [vmem:[%s10] sm:$0x1]
        %v2039 = vlaneseq
        %v2040 = vshrl.u32 %v2039, 7
        %v2041 = vsub.s32 0, %v2040
        %v2042 = vrot.slane %v2037, %v2041
        %v2048 = vunpack.c.l.b16 %v2033
        %v2049 = vunpack.c.l.b16 %v2034
        %v2050 = vunpack.c.l.b16 %v2035
        %v2051 = vunpack.c.l.b16 %v2036
        %v2052 = vpack.c.b16 %v2049, %v2048
        %v2053 = vpack.c.b16 %v2051, %v2050
        %v2057 = vsel %vm485, %v2032, 0
        %2059 = vmatprep.subr.bf16.mxu0 0
        %2060 = vmatpush1.bf16.msra.mxu0 %v2052
        %2061 = vmatprep.subr.bf16.mxu0 0
        %2062 = vmatpush1.bf16.msra.mxu0 %v2053
        %2063 = vmatprep.subr.bf16.mxu0 0
        %2064 = vmatpush1.bf16.msra.mxu0 0
        %2065 = vmatprep.subr.bf16.mxu0 0
        %2066 = vmatpush1.bf16.msra.mxu0 0
        %2067 = vmatprep.subr.bf16.mxu0 0
        %2068 = vmatpush1.bf16.msra.mxu0 0
        %2069 = vmatprep.subr.bf16.mxu0 0
        %2070 = vmatpush1.bf16.msra.mxu0 0
        %2071 = vmatprep.subr.bf16.mxu0 0
        %2072 = vmatpush1.bf16.msra.mxu0 0
        %2073 = vmatprep.subr.bf16.mxu0 0
        %2074 = vmatpush1.bf16.msra.mxu0 0
        %2075 = vmatprep.subr.bf16.mxu0 0
        %2076 = vmatpush1.bf16.msra.mxu0 0
        %2077 = vmatprep.subr.bf16.mxu0 0
        %2078 = vmatpush1.bf16.msra.mxu0 0
        %2079 = vmatprep.subr.bf16.mxu0 0
        %2080 = vmatpush1.bf16.msra.mxu0 0
        %2081 = vmatprep.subr.bf16.mxu0 0
        %2082 = vmatpush1.bf16.msra.mxu0 0
        %2083 = vmatprep.subr.bf16.mxu0 0
        %2084 = vmatpush1.bf16.msra.mxu0 0
        %2085 = vmatprep.subr.bf16.mxu0 0
        %2086 = vmatpush1.bf16.msra.mxu0 0
        %2087 = vmatprep.subr.bf16.mxu0 0
        %2088 = vmatpush1.bf16.msra.mxu0 0
        %2089 = vmatprep.subr.bf16.mxu0 0
        %2090 = vmatpush1.bf16.msra.mxu0 0
        %2091 = vmatprep.mubr.bf16.mxu0 0
        %2092 = vmatmul.mubr.bf16.gmra.mrb[0].mxu0 %v2057
        %v2093 = vpop.f32.mrb[0].mxu0
        %v2094 = vadd.f32 %v2042, %v2093
        %v2095 = vpop.f32.mrb[0].mxu0
        %v2096 = vpop.f32.mrb[0].mxu0
        %v2097 = vadd.f32 %v2042, %v2096
        %v2098 = vpop.f32.mrb[0].mxu0
        %2099 = vdwg.mxu0
        %v2100 = vmul.f32 %v2094, 0.5
        %v2101 = vmul.f32 %v2097, 0.5
        %v2102 = vmul.f32 %v2094, 0.044715
        %v2103 = vmul.f32 %v2097, 0.044715
        %v2104 = vmul.f32 %v2102, %v2094
        %v2105 = vmul.f32 %v2103, %v2097
        %v2106 = vmul.f32 %v2104, %v2094
        %v2107 = vmul.f32 %v2105, %v2097
        %v2108 = vadd.f32 %v2094, %v2106
        %v2109 = vadd.f32 %v2097, %v2107
        %v2110 = vmul.f32 %v2108, 0.7978846
        %v2111 = vmul.f32 %v2109, 0.7978846
        %v2112 = vtanh.pop %v2110
        %v2113 = vtanh.pop %v2111
        %v2114 = vadd.f32 %v2112, 1.0
        %v2115 = vadd.f32 %v2113, 1.0
        %v2116 = vmul.f32 %v2100, %v2114
        %v2117 = vmul.f32 %v2101, %v2115
        %v2118 = vpack.c.bf16 %v2117, %v2116
        %v2119 = vld [vmem:[%s11] sm:$0xf]
        %v2120 = vld [vmem:[%s11 + $0x4] sm:$0xf]
        %v2121 = vld [vmem:[%s11 + $0x8] sm:$0xf]
        %v2122 = vld [vmem:[%s11 + $0xc] sm:$0xf]
        %v2123 = vld [vmem:[%s11 + $0x10] sm:$0xf]
        %v2124 = vld [vmem:[%s11 + $0x14] sm:$0xf]
        %v2125 = vld [vmem:[%s11 + $0x18] sm:$0xf]
        %v2126 = vld [vmem:[%s11 + $0x1c] sm:$0xf]
        %v2127 = vld [vmem:[%s11 + $0x20] sm:$0xf]
        %v2128 = vld [vmem:[%s11 + $0x24] sm:$0xf]
        %v2129 = vld [vmem:[%s11 + $0x28] sm:$0xf]
        %v2130 = vld [vmem:[%s11 + $0x2c] sm:$0xf]
        %v2131 = vld [vmem:[%s11 + $0x30] sm:$0xf]
        %v2132 = vld [vmem:[%s11 + $0x34] sm:$0xf]
        %v2133 = vld [vmem:[%s11 + $0x38] sm:$0xf]
        %v2134 = vld [vmem:[%s11 + $0x3c] sm:$0xf]
        %v2135 = vld [vmem:[%s12] sm:$0x1]
        %v2137 = vlaneseq
        %v2138 = vshrl.u32 %v2137, 7
        %v2139 = vsub.s32 0, %v2138
        %v2140 = vrot.slane %v2135, %v2139
        %v2158 = vunpack.c.l.b16 %v2119
        %v2159 = vunpack.c.l.b16 %v2120
        %v2160 = vunpack.c.l.b16 %v2121
        %v2161 = vunpack.c.l.b16 %v2122
        %v2162 = vunpack.c.l.b16 %v2123
        %v2163 = vunpack.c.l.b16 %v2124
        %v2164 = vunpack.c.l.b16 %v2125
        %v2165 = vunpack.c.l.b16 %v2126
        %v2166 = vunpack.c.l.b16 %v2127
        %v2167 = vunpack.c.l.b16 %v2128
        %v2168 = vunpack.c.l.b16 %v2129
        %v2169 = vunpack.c.l.b16 %v2130
        %v2170 = vunpack.c.l.b16 %v2131
        %v2171 = vunpack.c.l.b16 %v2132
        %v2172 = vunpack.c.l.b16 %v2133
        %v2173 = vunpack.c.l.b16 %v2134
        %v2174 = vpack.c.b16 %v2159, %v2158
        %v2175 = vpack.c.b16 %v2161, %v2160
        %v2176 = vpack.c.b16 %v2163, %v2162
        %v2177 = vpack.c.b16 %v2165, %v2164
        %v2178 = vpack.c.b16 %v2167, %v2166
        %v2179 = vpack.c.b16 %v2169, %v2168
        %v2180 = vpack.c.b16 %v2171, %v2170
        %v2181 = vpack.c.b16 %v2173, %v2172
        %2190 = vmatprep.subr.bf16.mxu0 0
        %2191 = vmatpush1.bf16.msra.mxu0 %v2174
        %2192 = vmatprep.subr.bf16.mxu0 0
        %2193 = vmatpush1.bf16.msra.mxu0 %v2175
        %2194 = vmatprep.subr.bf16.mxu0 0
        %2195 = vmatpush1.bf16.msra.mxu0 %v2176
        %2196 = vmatprep.subr.bf16.mxu0 0
        %2197 = vmatpush1.bf16.msra.mxu0 %v2177
        %2198 = vmatprep.subr.bf16.mxu0 0
        %2199 = vmatpush1.bf16.msra.mxu0 %v2178
        %2200 = vmatprep.subr.bf16.mxu0 0
        %2201 = vmatpush1.bf16.msra.mxu0 %v2179
        %2202 = vmatprep.subr.bf16.mxu0 0
        %2203 = vmatpush1.bf16.msra.mxu0 %v2180
        %2204 = vmatprep.subr.bf16.mxu0 0
        %2205 = vmatpush1.bf16.msra.mxu0 %v2181
        %2206 = vmatprep.subr.bf16.mxu0 0
        %2207 = vmatpush1.bf16.msra.mxu0 0
        %2208 = vmatprep.subr.bf16.mxu0 0
        %2209 = vmatpush1.bf16.msra.mxu0 0
        %2210 = vmatprep.subr.bf16.mxu0 0
        %2211 = vmatpush1.bf16.msra.mxu0 0
        %2212 = vmatprep.subr.bf16.mxu0 0
        %2213 = vmatpush1.bf16.msra.mxu0 0
        %2214 = vmatprep.subr.bf16.mxu0 0
        %2215 = vmatpush1.bf16.msra.mxu0 0
        %2216 = vmatprep.subr.bf16.mxu0 0
        %2217 = vmatpush1.bf16.msra.mxu0 0
        %2218 = vmatprep.subr.bf16.mxu0 0
        %2219 = vmatpush1.bf16.msra.mxu0 0
        %2220 = vmatprep.subr.bf16.mxu0 0
        %2221 = vmatpush1.bf16.msra.mxu0 0
        %2222 = vmatprep.mubr.bf16.mxu0 0
        %2223 = vmatmul.mubr.bf16.gmra.mrb[0].mxu0 %v2118
        %v2224 = vpop.f32.mrb[0].mxu0
        %v2225 = vadd.f32 %v2140, %v2224
        %v2226 = vpop.f32.mrb[0].mxu0
        %v2227 = vpop.f32.mrb[0].mxu0
        %v2228 = vadd.f32 %v2140, %v2227
        %v2229 = vpop.f32.mrb[0].mxu0
        %2230 = vdwg.mxu0
        %v2231 = vadd.f32 %v1986, %v2225
        %v2232 = vadd.f32 %v1987, %v2228
        %2233 = vst.msk [vmem:[%s476] sm:$0xff] %vm485, %v2231
        %2234 = vst.msk [vmem:[%s476 + $0x8] sm:$0xff] %vm485, %v2232
        %s2235 = sand.u32 %s332, 1
        %s2236 = scalar_lea.sflag [#allocation11], %s2235
        %s2237 = sand.u32 %s332, 1
        %s2238 = smul.addr %s2237, 16
        %s2239 = scalar_lea.vmem [#allocation12], %s2238
        // Predicated region
        $region84: #{tpu_custom_call.1} parent=71 // pred_check
          %p2240 = pneg %p342
        $region85: #{tpu_custom_call.1} parent=71 // pred_check_branch
          %2242 = sbr.rel (%p2240) target = $region87
        $region86: #{tpu_custom_call.1} parent=71 // pred_region
          %s2243 = smul.u32 2, %s35
          %s2245 = ssub.s32 256, 256
          %2246 = vsyncadd %s2236, %s2245
          %s2247 = smul.addr %s34, 4
          %s2248 = sadd.s32 %s2243, %s2247
          %s2249 = smul.addr %s2248, 128
          %s2250 = scalar_lea.hbm %s13, %s2249
          %s2251 = sshll.u32 %s2239, 4
          %s2252 = int_to_ptr.vmem [resolvable:$true] %s2251
          %2257 = dma.vmem_to_hbm [thread:$0]  %s2252, 256, %s2250, %s2236, 128, 128, 8
        $region87: #{tpu_custom_call.1} parent=71 // pred_fallthru
          _
      $region72: #{tpu_custom_call.1} parent=5 // pred_fallthru
        _
      %p2258 = scmp.le.s32.totalorder 2, %s25
      // Predicated region
      $region88: #{tpu_custom_call.1} parent=5 // pred_check
        %p2259 = pneg %p2258
      $region89: #{tpu_custom_call.1} parent=5 // pred_check_branch
        %2261 = sbr.rel (%p2259) target = $region91
      $region90: #{tpu_custom_call.1} parent=5 // pred_region
        %s2262 = ssub.s32 %s25, 2
        // Predicated region
        $region92: #{tpu_custom_call.1} parent=90 // pred_check
          %p2263 = pneg %p348
        $region93: #{tpu_custom_call.1} parent=90 // pred_check_branch
          %2265 = sbr.rel (%p2263) target = $region95
        $region94: #{tpu_custom_call.1} parent=90 // pred_region
          %s2266 = sand.u32 %s333, 1
          %s2267 = scalar_lea.sflag [#allocation11], %s2266
          %s2268 = sand.u32 %s333, 1
          %s2269 = smul.addr %s2268, 16
          %s2270 = scalar_lea.vmem [#allocation12], %s2269
          %2271 = dma.done %s2267, 256
        $region95: #{tpu_custom_call.1} parent=90 // pred_fallthru
          _
      $region91: #{tpu_custom_call.1} parent=5 // pred_fallthru
        _
    $region6: #{tpu_custom_call.1} parent=1 // loop_footer
      %s29 = sadd.s32 1, %s25
    $region7: #{tpu_custom_call.1} parent=1 // loop_footer_branch
      %24 = sbr.rel target = $region3
    $region8: #{tpu_custom_call.1} parent=1 // loop_exit
      _
    %2272 = vsyncpa [#allocation10], 1
    %s2273 = scalar_lea.sflag [#allocation10], 1
    %2274 = vsyncpa %s2273, 1
    %2275 = vsyncpa [#allocation11], 1
    %s2276 = scalar_lea.sflag [#allocation11], 1
    %2277 = vsyncpa %s2276, 1

</llo_original>
